<compile_context>
chip_gen: v7x
topology: tpu7x:2x2x1
jax: 0.10.0
libtpu: 0.0.40
codegen_flags: <defaults>
</compile_context>

<pallas_src>
import functools

import jax
import jax.numpy as jnp
from jax.experimental import pallas as pl
from jax.experimental.pallas import tpu as pltpu


def _cdiv(a, b):
    return (a + b - 1) // b


# ------------------------------- kernel --------------------------------------


def _repvgg_kernel(x_ref, w_ref, b_ref, o_ref, *, KH, KW, Wp, n_out, Cin):
    # x_ref : (1, 1, L, Cin)        bf16 flat zero-padded row tile (+ halo rows)
    # w_ref : (KH*KW*Cin, Cout)     bf16 branch- & BN-folded weight
    # b_ref : (1, Cout)             f32  folded bias
    # o_ref : (1, 1, n_out, Cout)   f32  output tile (virtual width Wp)
    x = x_ref[0, 0]                      # (L, Cin)  bf16 — stays bf16 throughout
    w = w_ref[...]                       # (KH*KW*Cin, Cout) bf16
    cout = w.shape[1]

    # Per-tap matmul accumulation: tap (kh, kw) contributes
    #   x_flat[q + kh*Wp + kw, :] @ w[(kh*KW+kw)*Cin : .. , :]
    # to output row q.  No (n_out, KH*KW*Cin) patches buffer is materialized.
    acc = jnp.zeros((n_out, cout), jnp.float32)
    tap = 0
    for kh in range(KH):
        for kw in range(KW):
            d = kh * Wp + kw
            xt = x[d:d + n_out, :]                       # (n_out, Cin)  bf16
            wt = w[tap * Cin:(tap + 1) * Cin, :]         # (Cin, Cout)   bf16
            acc = acc + jnp.dot(xt, wt, preferred_element_type=jnp.float32)
            tap += 1

    # Epilogue in f32 (bias + ReLU6); the only cast is the final store cast.
    o_ref[0, 0] = jnp.clip(acc + b_ref[...], 0.0, 6.0).astype(o_ref.dtype)


# ------------------------------ wrapper ---------------------------------------


def _fold_conv_bn(w_oihw, gamma, beta, mean, var, eps=1e-5):
    """Fold eval-mode BatchNorm into conv weight/bias; return HWIO weight."""
    scale = gamma / jnp.sqrt(var + eps)                  # (Cout,)
    w = w_oihw * scale[:, None, None, None]              # (Cout, Cin, KH, KW)
    b = beta - mean * scale                              # (Cout,)
    return jnp.transpose(w, (2, 3, 1, 0)), b             # (KH, KW, Cin, Cout)


def _pick_tile_h(H, W, Cin, Cout, K, budget_bytes=12 * 1024 * 1024):
    """Largest multiple-of-8 row tile whose per-step VMEM stays under budget."""
    pad = K // 2
    Wp = W + 2 * pad

    def step_bytes(th):
        n_out = th * Wp
        in_blk = (th + 2 * pad + 1) * Wp * Cin * 2 * 2    # bf16, double-buffered
        out_blk = n_out * Cout * 4 * 2                    # f32, double-buffered
        acc = n_out * Cout * 4                            # f32 accumulator value
        taps = n_out * Cin * 2 * 2                        # a couple of live taps
        return in_blk + out_blk + acc + taps

    if H <= 8:
        return H
    th = 8
    cand = 16
    while cand <= H and step_bytes(cand) <= budget_bytes:
        th = cand
        cand += 8
    return th


def repvgg_block_forward(x_nchw, params, kernel_size=3, tile_h=None):
    """x_nchw: (N, Cin, H, W) float32.  Returns (N, Cout, H, W) float32."""
    K = kernel_size
    pad = K // 2

    # Fold BN into each branch, then fold both branches and the /2 average
    # into a single conv weight/bias (eval-mode semantics).
    w1, b1 = _fold_conv_bn(params["w1"], params["g1"], params["be1"],
                           params["m1"], params["v1"])
    w2, b2 = _fold_conv_bn(params["w2"], params["g2"], params["be2"],
                           params["m2"], params["v2"])
    w = 0.5 * (w1 + w2)                                   # (K, K, Cin, Cout) HWIO
    b = 0.5 * (b1 + b2)                                   # (Cout,)

    N, Cin, H, W = x_nchw.shape
    Cout = w.shape[-1]
    Wp = W + 2 * pad

    if tile_h is None:
        tile_h = _pick_tile_h(H, W, Cin, Cout, K)
    TH = min(tile_h, H)
    T = _cdiv(H, TH)
    H_ceil = T * TH
    R = TH + 2 * pad + 1          # halo rows + 1 spare row so tap slices stay in bounds
    n_out = TH * Wp               # output rows per tile (virtual width Wp)
    L = R * Wp

    # Cast to bf16 BEFORE the layout work (half the bytes per wrapper pass),
    # single pad call for spatial halo + bottom row-tile padding + spare row.
    x_bf = x_nchw.astype(jnp.bfloat16)
    x_nhwc = jnp.transpose(x_bf, (0, 2, 3, 1))                       # (N,H,W,Cin)
    x_sp = jnp.pad(x_nhwc, ((0, 0),
                            (pad, pad + (H_ceil - H) + 1),
                            (pad, pad),
                            (0, 0)))                                 # (N,Hp',Wp,Cin)

    # Overlapping H-halo row windows per tile (duplicates 2*pad+1 rows/tile).
    row_idx = jnp.arange(T)[:, None] * TH + jnp.arange(R)[None, :]   # (T, R)
    x_tiles = x_sp[:, row_idx].reshape(N, T, L, Cin)                 # (N,T,L,Cin)

    # Weight as (K*K*Cin, Cout) matching the kernel's tap order; bias as (1, Cout).
    w_mat = w.reshape(K * K * Cin, Cout).astype(jnp.bfloat16)
    b_row = b.reshape(1, Cout).astype(jnp.float32)

    kernel = functools.partial(_repvgg_kernel, KH=K, KW=K, Wp=Wp,
                               n_out=n_out, Cin=Cin)

    flops = 2 * N * H_ceil * Wp * K * K * Cin * Cout
    bytes_accessed = (x_tiles.size * 2 + w_mat.size * 2 + b_row.size * 4
                      + N * T * n_out * Cout * 4)

    out_tiles = pl.pallas_call(
        kernel,
        out_shape=jax.ShapeDtypeStruct((N, T, n_out, Cout), jnp.float32),
        grid_spec=pltpu.PrefetchScalarGridSpec(
            num_scalar_prefetch=0,
            grid=(N, T),
            in_specs=[
                pl.BlockSpec((1, 1, L, Cin), lambda n, t: (n, t, 0, 0)),
                pl.BlockSpec((K * K * Cin, Cout), lambda n, t: (0, 0)),
                pl.BlockSpec((1, Cout), lambda n, t: (0, 0)),
            ],
            out_specs=pl.BlockSpec((1, 1, n_out, Cout), lambda n, t: (n, t, 0, 0)),
        ),
        compiler_params=pltpu.CompilerParams(
            dimension_semantics=("parallel", "parallel"),
            vmem_limit_bytes=48 * 1024 * 1024),
        cost_estimate=pl.CostEstimate(flops=flops, transcendentals=0,
                                      bytes_accessed=bytes_accessed),
    )(x_tiles, w_mat, b_row)

    # Drop the pad/garbage columns, extra bottom rows and go back to NCHW.
    out = out_tiles.reshape(N, T * TH, Wp, Cout)[:, :H, :W, :]
    return jnp.transpose(out, (0, 3, 1, 2))


# ----------------------------- references -------------------------------------


def _reference_forward_f32(x_nchw, params, kernel_size=3):
    """Module-exact f32 reference: ReLU6((BN1(conv1 x) + BN2(conv2 x)) / 2)."""
    pad = kernel_size // 2
    w1, b1 = _fold_conv_bn(params["w1"], params["g1"], params["be1"],
                           params["m1"], params["v1"])
    w2, b2 = _fold_conv_bn(params["w2"], params["g2"], params["be2"],
                           params["m2"], params["v2"])
    x = jnp.transpose(x_nchw, (0, 2, 3, 1)).astype(jnp.float32)

    def conv(wi, bi):
        y = jax.lax.conv_general_dilated(
            x, wi, (1, 1), ((pad, pad), (pad, pad)),
            dimension_numbers=("NHWC", "HWIO", "NHWC"),
            precision=jax.lax.Precision.HIGHEST)
        return y + bi

    y = jnp.clip((conv(w1, b1) + conv(w2, b2)) * 0.5, 0.0, 6.0)
    return jnp.transpose(y, (0, 3, 1, 2))


def _reference_forward_matched(x_nchw, params, kernel_size=3):
    """Reference matching the kernel's data path (folded bf16 weight, bf16
    activations, f32 accumulation) for a tight logic check."""
    pad = kernel_size // 2
    w1, b1 = _fold_conv_bn(params["w1"], params["g1"], params["be1"],
                           params["m1"], params["v1"])
    w2, b2 = _fold_conv_bn(params["w2"], params["g2"], params["be2"],
                           params["m2"], params["v2"])
    w = (0.5 * (w1 + w2)).astype(jnp.bfloat16)
    b = 0.5 * (b1 + b2)
    x = jnp.transpose(x_nchw, (0, 2, 3, 1)).astype(jnp.bfloat16)
    y = jax.lax.conv_general_dilated(
        x, w, (1, 1), ((pad, pad), (pad, pad)),
        dimension_numbers=("NHWC", "HWIO", "NHWC"),
        preferred_element_type=jnp.float32)
    y = jnp.clip(y + b, 0.0, 6.0)
    return jnp.transpose(y, (0, 3, 1, 2))


# --------------------------------- main ----------------------------------------


def _make_params(key, Cin, Cout, K):
    ks = jax.random.split(key, 10)
    return {
        "w1": 0.1 * jax.random.normal(ks[0], (Cout, Cin, K, K), jnp.float32),
        "g1": 1.0 + 0.1 * jax.random.normal(ks[1], (Cout,), jnp.float32),
        "be1": 0.1 * jax.random.normal(ks[2], (Cout,), jnp.float32),
        "m1": 0.05 * jax.random.normal(ks[3], (Cout,), jnp.float32),
        "v1": jax.random.uniform(ks[4], (Cout,), jnp.float32, 0.5, 1.5),
        "w2": 0.1 * jax.random.normal(ks[5], (Cout, Cin, K, K), jnp.float32),
        "g2": 1.0 + 0.1 * jax.random.normal(ks[6], (Cout,), jnp.float32),
        "be2": 0.1 * jax.random.normal(ks[7], (Cout,), jnp.float32),
        "m2": 0.05 * jax.random.normal(ks[8], (Cout,), jnp.float32),
        "v2": jax.random.uniform(ks[9], (Cout,), jnp.float32, 0.5, 1.5),
    }


if __name__ == "__main__":
    key = jax.random.PRNGKey(0)
    kp, kx, kp2, kx2 = jax.random.split(key, 4)

    # ----- Config A: module-consistent small shapes (2, 4, 16, 16) -----------
    N, Cin, Cout, HW, K = 2, 4, 8, 16, 3
    params = _make_params(kp, Cin, Cout, K)
    x = jax.random.normal(kx, (N, Cin, HW, HW), jnp.float32)

    fwd = jax.jit(functools.partial(repvgg_block_forward, kernel_size=K, tile_h=8))
    out = jax.block_until_ready(fwd(x, params))
    assert out.shape == (N, Cout, HW, HW)

    # Tight check: kernel logic vs a lax conv using the identical bf16/f32 data
    # path (bf16 products, f32 accumulation) -> only summation-order ulps.
    ref_matched = _reference_forward_matched(x, params, kernel_size=K)
    assert jnp.allclose(out, ref_matched, atol=2e-4, rtol=2e-4), \
        "kernel logic mismatch vs matched-precision reference"

    # Semantics check vs the exact-f32 module math (tolerance covers bf16
    # rounding of the MXU operands).
    ref_f32 = _reference_forward_f32(x, params, kernel_size=K)
    assert jnp.allclose(out, ref_f32, atol=5e-2, rtol=5e-2), \
        "bf16 MXU path deviates too far from f32 module reference"

    # ----- Config B: realistic channel count, multi-row-tile grid ------------
    N2, Cin2, Cout2, HW2 = 1, 64, 64, 16
    params2 = _make_params(kp2, Cin2, Cout2, K)
    x2 = jax.random.normal(kx2, (N2, Cin2, HW2, HW2), jnp.float32)
    fwd2 = jax.jit(functools.partial(repvgg_block_forward, kernel_size=K, tile_h=8))
    out2 = jax.block_until_ready(fwd2(x2, params2))
    assert out2.shape == (N2, Cout2, HW2, HW2)
    ref2 = _reference_forward_matched(x2, params2, kernel_size=K)
    assert jnp.allclose(out2, ref2, atol=5e-4, rtol=5e-4), \
        "kernel logic mismatch vs matched-precision reference (config B)"

    print("KERNEL_OK")
</pallas_src>

<mosaic_0001>
module attributes {stable_mosaic.version = 11 : i64} {
  func.func @_repvgg_kernel(%arg0: i32, %arg1: i32, %arg2: memref<1x1x198x4xbf16, #tpu.memory_space<vmem>>, %arg3: memref<36x8xbf16, #tpu.memory_space<vmem>>, %arg4: memref<1x8xf32, #tpu.memory_space<vmem>>, %arg5: memref<1x1x144x8xf32, #tpu.memory_space<vmem>>) attributes {dimension_semantics = [#tpu.dimension_semantics<parallel>, #tpu.dimension_semantics<parallel>], iteration_bounds = array<i64: 2, 2>, scalar_prefetch = 0 : i64, scratch_operands = 0 : i64, tpu.core_type = #tpu.core_type<tc>, window_params = [{transform_indices = @transform_0, window_bounds = array<i64: 1, 1, 198, 4>}, {pipeline_mode = #tpu.pipeline_mode<synchronous>, transform_indices = @transform_1, window_bounds = array<i64: 36, 8>}, {pipeline_mode = #tpu.pipeline_mode<synchronous>, transform_indices = @transform_2, window_bounds = array<i64: 1, 8>}, {transform_indices = @transform_3, window_bounds = array<i64: 1, 1, 144, 8>}]} {
    %c0 = arith.constant 0 : index
    %c0_0 = arith.constant 0 : index
    %c0_1 = arith.constant 0 : index
    %c0_2 = arith.constant 0 : index
    %0 = vector.load %arg2[%c0, %c0_0, %c0_1, %c0_2] : memref<1x1x198x4xbf16, #tpu.memory_space<vmem>>, vector<1x1x198x4xbf16>
    %1 = vector.shape_cast %0 : vector<1x1x198x4xbf16> to vector<198x4xbf16>
    %c0_3 = arith.constant 0 : index
    %c0_4 = arith.constant 0 : index
    %2 = vector.load %arg3[%c0_3, %c0_4] : memref<36x8xbf16, #tpu.memory_space<vmem>>, vector<36x8xbf16>
    %cst = arith.constant 0.000000e+00 : f32
    %3 = vector.broadcast %cst : f32 to vector<144x8xf32>
    %4 = vector.extract_strided_slice %1 {offsets = [0, 0], sizes = [144, 4], strides = [1, 1]} : vector<198x4xbf16> to vector<144x4xbf16>
    %5 = vector.extract_strided_slice %2 {offsets = [0, 0], sizes = [4, 8], strides = [1, 1]} : vector<36x8xbf16> to vector<4x8xbf16>
    %cst_5 = arith.constant dense<0.000000e+00> : vector<144x8xf32>
    %6 = tpu.matmul %4, %5, %cst_5 {dimension_numbers = #tpu.dot_dimension_numbers<[1], [0], [0], [1], [0, 0, 1, 1], [], []>} : vector<144x4xbf16>, vector<4x8xbf16>, vector<144x8xf32> -> vector<144x8xf32>
    %7 = arith.addf %3, %6 : vector<144x8xf32>
    %8 = vector.extract_strided_slice %1 {offsets = [1, 0], sizes = [144, 4], strides = [1, 1]} : vector<198x4xbf16> to vector<144x4xbf16>
    %9 = vector.extract_strided_slice %2 {offsets = [4, 0], sizes = [4, 8], strides = [1, 1]} : vector<36x8xbf16> to vector<4x8xbf16>
    %cst_6 = arith.constant dense<0.000000e+00> : vector<144x8xf32>
    %10 = tpu.matmul %8, %9, %cst_6 {dimension_numbers = #tpu.dot_dimension_numbers<[1], [0], [0], [1], [0, 0, 1, 1], [], []>} : vector<144x4xbf16>, vector<4x8xbf16>, vector<144x8xf32> -> vector<144x8xf32>
    %11 = arith.addf %7, %10 : vector<144x8xf32>
    %12 = vector.extract_strided_slice %1 {offsets = [2, 0], sizes = [144, 4], strides = [1, 1]} : vector<198x4xbf16> to vector<144x4xbf16>
    %13 = vector.extract_strided_slice %2 {offsets = [8, 0], sizes = [4, 8], strides = [1, 1]} : vector<36x8xbf16> to vector<4x8xbf16>
    %cst_7 = arith.constant dense<0.000000e+00> : vector<144x8xf32>
    %14 = tpu.matmul %12, %13, %cst_7 {dimension_numbers = #tpu.dot_dimension_numbers<[1], [0], [0], [1], [0, 0, 1, 1], [], []>} : vector<144x4xbf16>, vector<4x8xbf16>, vector<144x8xf32> -> vector<144x8xf32>
    %15 = arith.addf %11, %14 : vector<144x8xf32>
    %16 = vector.extract_strided_slice %1 {offsets = [18, 0], sizes = [144, 4], strides = [1, 1]} : vector<198x4xbf16> to vector<144x4xbf16>
    %17 = vector.extract_strided_slice %2 {offsets = [12, 0], sizes = [4, 8], strides = [1, 1]} : vector<36x8xbf16> to vector<4x8xbf16>
    %cst_8 = arith.constant dense<0.000000e+00> : vector<144x8xf32>
    %18 = tpu.matmul %16, %17, %cst_8 {dimension_numbers = #tpu.dot_dimension_numbers<[1], [0], [0], [1], [0, 0, 1, 1], [], []>} : vector<144x4xbf16>, vector<4x8xbf16>, vector<144x8xf32> -> vector<144x8xf32>
    %19 = arith.addf %15, %18 : vector<144x8xf32>
    %20 = vector.extract_strided_slice %1 {offsets = [19, 0], sizes = [144, 4], strides = [1, 1]} : vector<198x4xbf16> to vector<144x4xbf16>
    %21 = vector.extract_strided_slice %2 {offsets = [16, 0], sizes = [4, 8], strides = [1, 1]} : vector<36x8xbf16> to vector<4x8xbf16>
    %cst_9 = arith.constant dense<0.000000e+00> : vector<144x8xf32>
    %22 = tpu.matmul %20, %21, %cst_9 {dimension_numbers = #tpu.dot_dimension_numbers<[1], [0], [0], [1], [0, 0, 1, 1], [], []>} : vector<144x4xbf16>, vector<4x8xbf16>, vector<144x8xf32> -> vector<144x8xf32>
    %23 = arith.addf %19, %22 : vector<144x8xf32>
    %24 = vector.extract_strided_slice %1 {offsets = [20, 0], sizes = [144, 4], strides = [1, 1]} : vector<198x4xbf16> to vector<144x4xbf16>
    %25 = vector.extract_strided_slice %2 {offsets = [20, 0], sizes = [4, 8], strides = [1, 1]} : vector<36x8xbf16> to vector<4x8xbf16>
    %cst_10 = arith.constant dense<0.000000e+00> : vector<144x8xf32>
    %26 = tpu.matmul %24, %25, %cst_10 {dimension_numbers = #tpu.dot_dimension_numbers<[1], [0], [0], [1], [0, 0, 1, 1], [], []>} : vector<144x4xbf16>, vector<4x8xbf16>, vector<144x8xf32> -> vector<144x8xf32>
    %27 = arith.addf %23, %26 : vector<144x8xf32>
    %28 = vector.extract_strided_slice %1 {offsets = [36, 0], sizes = [144, 4], strides = [1, 1]} : vector<198x4xbf16> to vector<144x4xbf16>
    %29 = vector.extract_strided_slice %2 {offsets = [24, 0], sizes = [4, 8], strides = [1, 1]} : vector<36x8xbf16> to vector<4x8xbf16>
    %cst_11 = arith.constant dense<0.000000e+00> : vector<144x8xf32>
    %30 = tpu.matmul %28, %29, %cst_11 {dimension_numbers = #tpu.dot_dimension_numbers<[1], [0], [0], [1], [0, 0, 1, 1], [], []>} : vector<144x4xbf16>, vector<4x8xbf16>, vector<144x8xf32> -> vector<144x8xf32>
    %31 = arith.addf %27, %30 : vector<144x8xf32>
    %32 = vector.extract_strided_slice %1 {offsets = [37, 0], sizes = [144, 4], strides = [1, 1]} : vector<198x4xbf16> to vector<144x4xbf16>
    %33 = vector.extract_strided_slice %2 {offsets = [28, 0], sizes = [4, 8], strides = [1, 1]} : vector<36x8xbf16> to vector<4x8xbf16>
    %cst_12 = arith.constant dense<0.000000e+00> : vector<144x8xf32>
    %34 = tpu.matmul %32, %33, %cst_12 {dimension_numbers = #tpu.dot_dimension_numbers<[1], [0], [0], [1], [0, 0, 1, 1], [], []>} : vector<144x4xbf16>, vector<4x8xbf16>, vector<144x8xf32> -> vector<144x8xf32>
    %35 = arith.addf %31, %34 : vector<144x8xf32>
    %36 = vector.extract_strided_slice %1 {offsets = [38, 0], sizes = [144, 4], strides = [1, 1]} : vector<198x4xbf16> to vector<144x4xbf16>
    %37 = vector.extract_strided_slice %2 {offsets = [32, 0], sizes = [4, 8], strides = [1, 1]} : vector<36x8xbf16> to vector<4x8xbf16>
    %cst_13 = arith.constant dense<0.000000e+00> : vector<144x8xf32>
    %38 = tpu.matmul %36, %37, %cst_13 {dimension_numbers = #tpu.dot_dimension_numbers<[1], [0], [0], [1], [0, 0, 1, 1], [], []>} : vector<144x4xbf16>, vector<4x8xbf16>, vector<144x8xf32> -> vector<144x8xf32>
    %39 = arith.addf %35, %38 : vector<144x8xf32>
    %c0_14 = arith.constant 0 : index
    %c0_15 = arith.constant 0 : index
    %40 = vector.load %arg4[%c0_14, %c0_15] : memref<1x8xf32, #tpu.memory_space<vmem>>, vector<1x8xf32>
    %41 = vector.broadcast %40 : vector<1x8xf32> to vector<144x8xf32>
    %42 = arith.addf %39, %41 : vector<144x8xf32>
    %cst_16 = arith.constant 0.000000e+00 : f32
    %cst_17 = arith.constant 6.000000e+00 : f32
    %43 = vector.broadcast %cst_16 : f32 to vector<144x8xf32>
    %44 = arith.maximumf %43, %42 : vector<144x8xf32>
    %45 = vector.broadcast %cst_17 : f32 to vector<144x8xf32>
    %46 = arith.minimumf %45, %44 : vector<144x8xf32>
    %c0_18 = arith.constant 0 : index
    %c0_19 = arith.constant 0 : index
    %c0_20 = arith.constant 0 : index
    %c0_21 = arith.constant 0 : index
    %47 = vector.load %arg5[%c0_18, %c0_19, %c0_20, %c0_21] : memref<1x1x144x8xf32, #tpu.memory_space<vmem>>, vector<1x1x144x8xf32>
    %48 = vector.shape_cast %47 : vector<1x1x144x8xf32> to vector<144x8xf32>
    %49 = vector.shape_cast %46 : vector<144x8xf32> to vector<1x1x144x8xf32>
    tpu.vector_store %arg5[%c0_18, %c0_19, %c0_20, %c0_21], %49 {strides = array<i32>} : memref<1x1x144x8xf32, #tpu.memory_space<vmem>>, vector<1x1x144x8xf32>,
    return
  }
  func.func @transform_0(%arg0: i32, %arg1: i32) -> (i32, i32, i32, i32) {
    %c0_i32 = arith.constant 0 : i32
    %c0_i32_0 = arith.constant 0 : i32
    %c0_i32_1 = arith.constant 0 : i32
    return %arg0, %arg1, %c0_i32, %c0_i32_0 : i32, i32, i32, i32
  }
  func.func @transform_1(%arg0: i32, %arg1: i32) -> (i32, i32) {
    %c0_i32 = arith.constant 0 : i32
    %c0_i32_0 = arith.constant 0 : i32
    %c0_i32_1 = arith.constant 0 : i32
    return %c0_i32, %c0_i32_0 : i32, i32
  }
  func.func @transform_2(%arg0: i32, %arg1: i32) -> (i32, i32) {
    %c0_i32 = arith.constant 0 : i32
    %c0_i32_0 = arith.constant 0 : i32
    %c0_i32_1 = arith.constant 0 : i32
    return %c0_i32, %c0_i32_0 : i32, i32
  }
  func.func @transform_3(%arg0: i32, %arg1: i32) -> (i32, i32, i32, i32) {
    %c0_i32 = arith.constant 0 : i32
    %c0_i32_0 = arith.constant 0 : i32
    %c0_i32_1 = arith.constant 0 : i32
    return %arg0, %arg1, %c0_i32, %c0_i32_0 : i32, i32, i32, i32
  }
}

</mosaic_0001>

<llo_original>
// kernel: repvgg_block_forward.1
$region0: #{repvgg_block_forward.1}
  #allocation0 [shape = 'u32[]', space=smem, size = 0x4, offset = 0x4, fixed_abs, tag = 'smem constant byte address 0x4 - core index']
  #allocation1 [shape = 'u32[144,128]{1,0:T(1,128)}', space=vmem, size = 0x12000, scoped, tag = 'internal scratch']
  %s0 = inlined_call_operand.vmem [shape: bf16[2,2,198,4], index: 0, kind: input, shape index: {}]
  %s1 = inlined_call_operand.vmem [shape: bf16[36,8], index: 1, kind: input, shape index: {}]
  %s2 = inlined_call_operand.vmem [shape: f32[1,8], index: 2, kind: input, shape index: {}]
  %s3 = inlined_call_operand.vmem [shape: f32[2,2,144,8], index: 3, kind: output, shape index: {}]
  %s4 = sld [smem:[#allocation0]]
  $region45: #{repvgg_block_forward.1} parent=0
    _
  %s6 = ssub.s32 1, %s4
  %s7 = scalar_select 0, %s6, %s4
  loop: start=0, step=1, limit=6
  $region2: #{repvgg_block_forward.1} parent=0 // loop_pre_header
    _
  $region3: #{repvgg_block_forward.1} parent=0 // loop_header
    %s9 = sphi 0, %s13
    %p10 = scmp.ge.s32.totalorder %s9, 6
    %s16 = sphi 0, %s28
    %s17 = sphi 0, %s24
    %s18 = sphi 0, %s16
    %s19 = sphi 0, %s17
    %s20 = sphi 0, %s18
    %s21 = sphi 0, %s19
    %s33 = sphi 0, %s35
    %s36 = sphi 0, %s33
    %s37 = sphi 0, %s36
    %s53 = sphi 0, %s37
    %s57 = sphi 0, %s57
    %s59 = sphi 0, %s57
    %s60 = sphi 0, %s59
    %s74 = sphi 0, %s60
    %s78 = sphi 0, %s78
    %s80 = sphi 0, %s78
    %s81 = sphi 0, %s80
    %s95 = sphi 0, %s81
    %s103 = sphi 0, %s105
    %s106 = sphi 0, %s103
    %s107 = sphi 0, %s106
    %s123 = sphi 0, %s107
  $region4: #{repvgg_block_forward.1} parent=0 // loop_header_branch
    %12 = sbr.rel (%p10) target = $region8
  $region5: #{repvgg_block_forward.1} parent=0 // loop_body
    %s14 = ssub.s32 %s9, 1
    %s15 = ssub.s32 %s9, 2
    %s22 = sadd.s32 1, %s17
    %p23 = scmp.ge.s32.totalorder %s22, 2
    %s24 = scalar_select %p23, 0, %s22
    %s25 = sadd.s32 1, %s16
    %s26 = scalar_select %p23, %s25, %s16
    %p27 = scmp.ge.s32.totalorder %s26, 2
    %s28 = scalar_select %p27, 0, %s26
    %s29 = ssub.s32 %s16, %s28
    %s30 = ssub.s32 %s17, %s24
    %s31 = sor.u32 %s29, %s30
    %p32 = scmp.eq.s32.totalorder %s31, 0
    %s34 = sadd.s32 %s33, 1
    %s35 = scalar_select %p32, %s33, %s34
    %p38 = pneg %p32
    %p39 = scmp.eq.s32.totalorder %s9, 3
    %p40 = por %p38, %p39
    %p41 = scmp.ne.s32.totalorder %s33, %s36
    %p42 = scmp.eq.s32.totalorder %s9, 0
    %p43 = por %p41, %p42
    %p44 = scmp.ne.s32.totalorder %s33, %s36
    %p45 = scmp.eq.s32.totalorder %s14, 3
    %p46 = por %p44, %p45
    %p47 = scmp.ne.s32.totalorder %s36, %s37
    %p48 = scmp.eq.s32.totalorder %s14, 0
    %p49 = por %p47, %p48
    %p50 = scmp.ne.s32.totalorder %s36, %s37
    %p51 = scmp.eq.s32.totalorder %s15, 3
    %p52 = por %p50, %p51
    %p54 = scmp.ne.s32.totalorder %s37, %s53
    %p55 = scmp.eq.s32.totalorder %s15, 0
    %p56 = por %p54, %p55
    %s58 = sadd.s32 %s57, 1
    %p61 = scmp.eq.s32.totalorder %s9, 3
    %p62 = scmp.ne.s32.totalorder %s57, %s59
    %p63 = scmp.eq.s32.totalorder %s9, 0
    %p64 = por %p62, %p63
    %p65 = scmp.ne.s32.totalorder %s57, %s59
    %p66 = scmp.eq.s32.totalorder %s14, 3
    %p67 = por %p65, %p66
    %p68 = scmp.ne.s32.totalorder %s59, %s60
    %p69 = scmp.eq.s32.totalorder %s14, 0
    %p70 = por %p68, %p69
    %p71 = scmp.ne.s32.totalorder %s59, %s60
    %p72 = scmp.eq.s32.totalorder %s15, 3
    %p73 = por %p71, %p72
    %p75 = scmp.ne.s32.totalorder %s60, %s74
    %p76 = scmp.eq.s32.totalorder %s15, 0
    %p77 = por %p75, %p76
    %s79 = sadd.s32 %s78, 1
    %p82 = scmp.eq.s32.totalorder %s9, 3
    %p83 = scmp.ne.s32.totalorder %s78, %s80
    %p84 = scmp.eq.s32.totalorder %s9, 0
    %p85 = por %p83, %p84
    %p86 = scmp.ne.s32.totalorder %s78, %s80
    %p87 = scmp.eq.s32.totalorder %s14, 3
    %p88 = por %p86, %p87
    %p89 = scmp.ne.s32.totalorder %s80, %s81
    %p90 = scmp.eq.s32.totalorder %s14, 0
    %p91 = por %p89, %p90
    %p92 = scmp.ne.s32.totalorder %s80, %s81
    %p93 = scmp.eq.s32.totalorder %s15, 3
    %p94 = por %p92, %p93
    %p96 = scmp.ne.s32.totalorder %s81, %s95
    %p97 = scmp.eq.s32.totalorder %s15, 0
    %p98 = por %p96, %p97
    %s99 = ssub.s32 %s16, %s28
    %s100 = ssub.s32 %s17, %s24
    %s101 = sor.u32 %s99, %s100
    %p102 = scmp.eq.s32.totalorder %s101, 0
    %s104 = sadd.s32 %s103, 1
    %s105 = scalar_select %p102, %s103, %s104
    %p108 = pneg %p102
    %p109 = scmp.eq.s32.totalorder %s9, 3
    %p110 = por %p108, %p109
    %p111 = scmp.ne.s32.totalorder %s103, %s106
    %p112 = scmp.eq.s32.totalorder %s9, 0
    %p113 = por %p111, %p112
    %p114 = scmp.ne.s32.totalorder %s103, %s106
    %p115 = scmp.eq.s32.totalorder %s14, 3
    %p116 = por %p114, %p115
    %p117 = scmp.ne.s32.totalorder %s106, %s107
    %p118 = scmp.eq.s32.totalorder %s14, 0
    %p119 = por %p117, %p118
    %p120 = scmp.ne.s32.totalorder %s106, %s107
    %p121 = scmp.eq.s32.totalorder %s15, 3
    %p122 = por %p120, %p121
    %p124 = scmp.ne.s32.totalorder %s107, %s123
    %p125 = scmp.eq.s32.totalorder %s15, 0
    %p126 = por %p124, %p125
    %p127 = scmp.le.s32.totalorder 1, %s9
    %p128 = scmp.lt.s32.totalorder %s9, 5
    %p129 = pnand %p127, %p128
    %p130 = pneg %p129
    // Predicated region
    $region9: #{repvgg_block_forward.1} parent=5 // pred_check
      _
    $region10: #{repvgg_block_forward.1} parent=5 // pred_check_branch
      %132 = sbr.rel (%p129) target = $region12
    $region11: #{repvgg_block_forward.1} parent=5 // pred_region
      %s133 = ssub.s32 %s9, 1
      // Predicated region
      $region13: #{repvgg_block_forward.1} parent=11 // pred_check
        %p134 = pneg %p70
      $region14: #{repvgg_block_forward.1} parent=11 // pred_check_branch
        %136 = sbr.rel (%p134) target = $region16
      $region15: #{repvgg_block_forward.1} parent=11 // pred_region
        _
      $region16: #{repvgg_block_forward.1} parent=11 // pred_fallthru
        _
      // Predicated region
      $region17: #{repvgg_block_forward.1} parent=11 // pred_check
        %p137 = pneg %p91
      $region18: #{repvgg_block_forward.1} parent=11 // pred_check_branch
        %139 = sbr.rel (%p137) target = $region20
      $region19: #{repvgg_block_forward.1} parent=11 // pred_region
        _
      $region20: #{repvgg_block_forward.1} parent=11 // pred_fallthru
        _
    $region12: #{repvgg_block_forward.1} parent=5 // pred_fallthru
      _
    %p140 = scmp.lt.s32.totalorder %s9, 4
    // Predicated region
    $region21: #{repvgg_block_forward.1} parent=5 // pred_check
      %p141 = pneg %p140
    $region22: #{repvgg_block_forward.1} parent=5 // pred_check_branch
      %143 = sbr.rel (%p141) target = $region24
    $region23: #{repvgg_block_forward.1} parent=5 // pred_region
      // Predicated region
      $region25: #{repvgg_block_forward.1} parent=23 // pred_check
        %p144 = pneg %p43
      $region26: #{repvgg_block_forward.1} parent=23 // pred_check_branch
        %146 = sbr.rel (%p144) target = $region28
      $region27: #{repvgg_block_forward.1} parent=23 // pred_region
        %p147 = scmp.lt.s32.totalorder %s16, 1
        %s148 = scalar_select %p147, %s16, 1
        %p149 = scmp.lt.s32.totalorder %s17, 1
        %s150 = scalar_select %p149, %s17, 1
        %s151 = smul.addr %s150, 25
        %s152 = smul.addr %s148, 50
        %s153 = sadd.s32 %s151, %s152
        %s154 = smul.addr %s153, 4
        %s155 = scalar_lea.vmem %s0, %s154
      $region28: #{repvgg_block_forward.1} parent=23 // pred_fallthru
        _
    $region24: #{repvgg_block_forward.1} parent=5 // pred_fallthru
      _
    %p156 = scmp.le.s32.totalorder 1, %s9
    %p157 = scmp.lt.s32.totalorder %s9, 5
    %p158 = pnand %p156, %p157
    %p159 = pneg %p158
    // Predicated region
    $region29: #{repvgg_block_forward.1} parent=5 // pred_check
      _
    $region30: #{repvgg_block_forward.1} parent=5 // pred_check_branch
      %161 = sbr.rel (%p158) target = $region32
    $region31: #{repvgg_block_forward.1} parent=5 // pred_region
      %s162 = ssub.s32 %s9, 1
      %p163 = scmp.lt.s32.totalorder %s18, 1
      %s164 = scalar_select %p163, %s18, 1
      %p165 = scmp.lt.s32.totalorder %s19, 1
      %s166 = scalar_select %p165, %s19, 1
      %s167 = smul.addr %s166, 25
      %s168 = smul.addr %s164, 50
      %s169 = sadd.s32 %s167, %s168
      %s170 = smul.addr %s169, 4
      %s171 = scalar_lea.vmem %s0, %s170
      %p172 = pneg %p49
      %p173 = pneg %p46
      %p174 = pneg %p70
      %p175 = pneg %p67
      %p176 = pneg %p91
      %p177 = pneg %p88
      %p178 = pneg %p119
      %p179 = pneg %p116
      %p180 = scmp.lt.s32.totalorder %s18, 1
      %s181 = scalar_select %p180, %s18, 1
      %p182 = scmp.lt.s32.totalorder %s19, 1
      %s183 = scalar_select %p182, %s19, 1
      %s184 = smul.addr %s183, 18
      %s185 = smul.addr %s181, 36
      %s186 = sadd.s32 %s184, %s185
      %s187 = smul.addr %s186, 8
      %s188 = scalar_lea.vmem %s3, %s187
      %p189 = scmp.lt.s32.totalorder %s18, 1
      %s190 = scalar_select %p189, %s18, 1
      %p191 = scmp.lt.s32.totalorder %s19, 1
      %s192 = scalar_select %p191, %s19, 1
      %s193 = smul.addr %s192, 25
      %s194 = smul.addr %s190, 50
      %s195 = sadd.s32 %s193, %s194
      %s196 = smul.addr %s195, 4
      %s197 = scalar_lea.vmem %s0, %s196
      %p198 = scmp.lt.s32.totalorder %s18, 1
      %s199 = scalar_select %p198, %s18, 1
      %p200 = scmp.lt.s32.totalorder %s19, 1
      %s201 = scalar_select %p200, %s19, 1
      %s202 = smul.addr %s201, 18
      %s203 = smul.addr %s199, 36
      %s204 = sadd.s32 %s202, %s203
      %s205 = smul.addr %s204, 8
      %s206 = scalar_lea.vmem %s3, %s205
      %v208 = vld [vmem:[%s197] sm:$0xf]
      %v209 = vld [vmem:[%s197 + $0x4] sm:$0xf]
      %v210 = vld [vmem:[%s197 + $0x8] sm:$0xf]
      %v211 = vld [vmem:[%s197 + $0xc] sm:$0xf]
      %v212 = vld [vmem:[%s197 + $0x10] sm:$0xf]
      %v213 = vld [vmem:[%s197 + $0x14] sm:$0xf]
      %v214 = vld [vmem:[%s197 + $0x18] sm:$0xf]
      %v215 = vld [vmem:[%s197 + $0x1c] sm:$0xf]
      %v216 = vld [vmem:[%s197 + $0x20] sm:$0xf]
      %v217 = vld [vmem:[%s197 + $0x24] sm:$0xf]
      %v218 = vld [vmem:[%s197 + $0x28] sm:$0xf]
      %v219 = vld [vmem:[%s197 + $0x2c] sm:$0xf]
      %v220 = vld [vmem:[%s197 + $0x30] sm:$0xf]
      %v221 = vld [vmem:[%s197 + $0x34] sm:$0xf]
      %v222 = vld [vmem:[%s197 + $0x38] sm:$0xf]
      %v223 = vld [vmem:[%s197 + $0x3c] sm:$0xf]
      %v224 = vld [vmem:[%s197 + $0x40] sm:$0xf]
      %v225 = vld [vmem:[%s197 + $0x44] sm:$0xf]
      %v226 = vld [vmem:[%s197 + $0x48] sm:$0xf]
      %v227 = vld [vmem:[%s197 + $0x4c] sm:$0xf]
      %v228 = vld [vmem:[%s197 + $0x50] sm:$0xf]
      %v229 = vld [vmem:[%s197 + $0x54] sm:$0xf]
      %v230 = vld [vmem:[%s197 + $0x58] sm:$0xf]
      %v231 = vld [vmem:[%s1] sm:$0xf]
      %v232 = vld [vmem:[%s1 + $0x4] sm:$0xf]
      %v233 = vld [vmem:[%s1 + $0x8] sm:$0xf]
      %v234 = vld [vmem:[%s1 + $0xc] sm:$0xf]
      %v235 = vld [vmem:[%s1 + $0x10] sm:$0x3]
      %v255 = vunpack.c.l.b16 %v208
      %v256 = vunpack.c.l.b16 %v209
      %v257 = vunpack.c.l.b16 %v210
      %v258 = vunpack.c.l.b16 %v211
      %v259 = vunpack.c.l.b16 %v212
      %v260 = vunpack.c.l.b16 %v213
      %v261 = vunpack.c.l.b16 %v214
      %v262 = vunpack.c.l.b16 %v215
      %v263 = vunpack.c.l.b16 %v216
      %v264 = vunpack.c.l.b16 %v217
      %v265 = vunpack.c.l.b16 %v218
      %v266 = vunpack.c.l.b16 %v219
      %v267 = vunpack.c.l.b16 %v220
      %v268 = vunpack.c.l.b16 %v221
      %v269 = vunpack.c.l.b16 %v222
      %v270 = vunpack.c.l.b16 %v223
      %v271 = vunpack.c.l.b16 %v224
      %v272 = vunpack.c.l.b16 %v225
      %v273 = vunpack.c.l.b16 %v226
      %v274 = vpack.c.b16 %v256, %v255
      %v275 = vpack.c.b16 %v258, %v257
      %v276 = vpack.c.b16 %v260, %v259
      %v277 = vpack.c.b16 %v262, %v261
      %v278 = vpack.c.b16 %v264, %v263
      %v279 = vpack.c.b16 %v266, %v265
      %v280 = vpack.c.b16 %v268, %v267
      %v281 = vpack.c.b16 %v270, %v269
      %v282 = vpack.c.b16 %v272, %v271
      %v283 = vpack.c.b16 %v273, %v273
      %vm284 = vsmask.f32 7424
      %v286 = vshrl.u32 %v274, 16
      %v288 = vshll.u32 %v274, 16
      %v290 = vrot.slane %v288, 1
      %v291 = vor.u32 %v286, %v290
      %v293 = vshll.u32 %v275, 16
      %v295 = vrot.slane %v293, 1
      %v296 = vsel %vm284, %v291, %v295
      %v297 = vshrl.u32 %v275, 16
      %v299 = vor.u32 %v297, %v295
      %v301 = vshll.u32 %v276, 16
      %v303 = vrot.slane %v301, 1
      %v304 = vsel %vm284, %v299, %v303
      %v305 = vshrl.u32 %v276, 16
      %v307 = vor.u32 %v305, %v303
      %v309 = vshll.u32 %v277, 16
      %v311 = vrot.slane %v309, 1
      %v312 = vsel %vm284, %v307, %v311
      %v313 = vshrl.u32 %v277, 16
      %v315 = vor.u32 %v313, %v311
      %v317 = vshll.u32 %v278, 16
      %v319 = vrot.slane %v317, 1
      %v320 = vsel %vm284, %v315, %v319
      %v321 = vshrl.u32 %v278, 16
      %v323 = vor.u32 %v321, %v319
      %v325 = vshll.u32 %v279, 16
      %v327 = vrot.slane %v325, 1
      %v328 = vsel %vm284, %v323, %v327
      %v329 = vshrl.u32 %v279, 16
      %v331 = vor.u32 %v329, %v327
      %v333 = vshll.u32 %v280, 16
      %v335 = vrot.slane %v333, 1
      %v336 = vsel %vm284, %v331, %v335
      %v337 = vshrl.u32 %v280, 16
      %v339 = vor.u32 %v337, %v335
      %v341 = vshll.u32 %v281, 16
      %v343 = vrot.slane %v341, 1
      %v344 = vsel %vm284, %v339, %v343
      %v345 = vshrl.u32 %v281, 16
      %v347 = vor.u32 %v345, %v343
      %v349 = vshll.u32 %v282, 16
      %v351 = vrot.slane %v349, 1
      %v352 = vsel %vm284, %v347, %v351
      %v353 = vshrl.u32 %v282, 16
      %v355 = vor.u32 %v353, %v351
      %v357 = vshll.u32 %v283, 16
      %v359 = vrot.slane %v357, 1
      %v360 = vsel %vm284, %v355, %v359
      %v362 = vunpack.c.l.b16 %v231
      %v363 = vpack.c.b16 %v362, %v362
      %v364 = vrot.slane %v363, 2
      %vm365 = vcmask 31744
      %v367 = vsel %vm365, %v296, 0
      %v370 = vsel %vm365, %v304, 0
      %v373 = vsel %vm365, %v312, 0
      %v376 = vsel %vm365, %v320, 0
      %v379 = vsel %vm365, %v328, 0
      %v382 = vsel %vm365, %v336, 0
      %v385 = vsel %vm365, %v344, 0
      %v388 = vsel %vm365, %v352, 0
      %v391 = vsel %vm365, %v360, 0
      %vm393 = vcmask 1041408
      %v395 = vsel %vm393, %v364, 0
      %397 = vmatprep.subr.bf16.mxu0 0
      %398 = vmatpush1.bf16.msra.mxu0 %v395
      %399 = vmatprep.subr.bf16.mxu0 0
      %400 = vmatpush1.bf16.msra.mxu0 0
      %401 = vmatprep.subr.bf16.mxu0 0
      %402 = vmatpush1.bf16.msra.mxu0 0
      %403 = vmatprep.subr.bf16.mxu0 0
      %404 = vmatpush1.bf16.msra.mxu0 0
      %405 = vmatprep.subr.bf16.mxu0 0
      %406 = vmatpush1.bf16.msra.mxu0 0
      %407 = vmatprep.subr.bf16.mxu0 0
      %408 = vmatpush1.bf16.msra.mxu0 0
      %409 = vmatprep.subr.bf16.mxu0 0
      %410 = vmatpush1.bf16.msra.mxu0 0
      %411 = vmatprep.subr.bf16.mxu0 0
      %412 = vmatpush1.bf16.msra.mxu0 0
      %413 = vmatprep.subr.bf16.mxu0 0
      %414 = vmatpush1.bf16.msra.mxu0 0
      %415 = vmatprep.subr.bf16.mxu0 0
      %416 = vmatpush1.bf16.msra.mxu0 0
      %417 = vmatprep.subr.bf16.mxu0 0
      %418 = vmatpush1.bf16.msra.mxu0 0
      %419 = vmatprep.subr.bf16.mxu0 0
      %420 = vmatpush1.bf16.msra.mxu0 0
      %421 = vmatprep.subr.bf16.mxu0 0
      %422 = vmatpush1.bf16.msra.mxu0 0
      %423 = vmatprep.subr.bf16.mxu0 0
      %424 = vmatpush1.bf16.msra.mxu0 0
      %425 = vmatprep.subr.bf16.mxu0 0
      %426 = vmatpush1.bf16.msra.mxu0 0
      %427 = vmatprep.subr.bf16.mxu0 0
      %428 = vmatpush1.bf16.msra.mxu0 0
      %429 = vmatprep.mubr.bf16.mxu0 0
      %430 = vmatmul.mubr.bf16.gmra.mrb[0].mxu0 %v367
      %v431 = vpop.f32.mrb[0].mxu0
      %v432 = vadd.f32 0.0, %v431
      %v433 = vpop.f32.mrb[0].mxu0
      %v434 = vpop.f32.mrb[0].mxu0
      %v435 = vadd.f32 0.0, %v434
      %v436 = vpop.f32.mrb[0].mxu0
      %437 = vmatprep.mubr.bf16.mxu0 0
      %438 = vmatmul.mubr.bf16.gmra.mrb[0].mxu0 %v370
      %v439 = vpop.f32.mrb[0].mxu0
      %v440 = vadd.f32 0.0, %v439
      %v441 = vpop.f32.mrb[0].mxu0
      %v442 = vpop.f32.mrb[0].mxu0
      %v443 = vadd.f32 0.0, %v442
      %v444 = vpop.f32.mrb[0].mxu0
      %445 = vmatprep.mubr.bf16.mxu0 0
      %446 = vmatmul.mubr.bf16.gmra.mrb[0].mxu0 %v373
      %v447 = vpop.f32.mrb[0].mxu0
      %v448 = vadd.f32 0.0, %v447
      %v449 = vpop.f32.mrb[0].mxu0
      %v450 = vpop.f32.mrb[0].mxu0
      %v451 = vadd.f32 0.0, %v450
      %v452 = vpop.f32.mrb[0].mxu0
      %453 = vmatprep.mubr.bf16.mxu0 0
      %454 = vmatmul.mubr.bf16.gmra.mrb[0].mxu0 %v376
      %v455 = vpop.f32.mrb[0].mxu0
      %v456 = vadd.f32 0.0, %v455
      %v457 = vpop.f32.mrb[0].mxu0
      %v458 = vpop.f32.mrb[0].mxu0
      %v459 = vadd.f32 0.0, %v458
      %v460 = vpop.f32.mrb[0].mxu0
      %461 = vmatprep.mubr.bf16.mxu0 0
      %462 = vmatmul.mubr.bf16.gmra.mrb[0].mxu0 %v379
      %v463 = vpop.f32.mrb[0].mxu0
      %v464 = vadd.f32 0.0, %v463
      %v465 = vpop.f32.mrb[0].mxu0
      %v466 = vpop.f32.mrb[0].mxu0
      %v467 = vadd.f32 0.0, %v466
      %v468 = vpop.f32.mrb[0].mxu0
      %469 = vmatprep.mubr.bf16.mxu0 0
      %470 = vmatmul.mubr.bf16.gmra.mrb[0].mxu0 %v382
      %v471 = vpop.f32.mrb[0].mxu0
      %v472 = vadd.f32 0.0, %v471
      %v473 = vpop.f32.mrb[0].mxu0
      %v474 = vpop.f32.mrb[0].mxu0
      %v475 = vadd.f32 0.0, %v474
      %v476 = vpop.f32.mrb[0].mxu0
      %477 = vmatprep.mubr.bf16.mxu0 0
      %478 = vmatmul.mubr.bf16.gmra.mrb[0].mxu0 %v385
      %v479 = vpop.f32.mrb[0].mxu0
      %v480 = vadd.f32 0.0, %v479
      %v481 = vpop.f32.mrb[0].mxu0
      %v482 = vpop.f32.mrb[0].mxu0
      %v483 = vadd.f32 0.0, %v482
      %v484 = vpop.f32.mrb[0].mxu0
      %485 = vmatprep.mubr.bf16.mxu0 0
      %486 = vmatmul.mubr.bf16.gmra.mrb[0].mxu0 %v388
      %v487 = vpop.f32.mrb[0].mxu0
      %v488 = vadd.f32 0.0, %v487
      %v489 = vpop.f32.mrb[0].mxu0
      %v490 = vpop.f32.mrb[0].mxu0
      %v491 = vadd.f32 0.0, %v490
      %v492 = vpop.f32.mrb[0].mxu0
      %493 = vmatprep.mubr.bf16.mxu0 0
      %494 = vmatmul.mubr.bf16.gmra.mrb[0].mxu0 %v391
      %v495 = vpop.f32.mrb[0].mxu0
      %v496 = vadd.f32 0.0, %v495
      %v497 = vpop.f32.mrb[0].mxu0
      %v498 = vpop.f32.mrb[0].mxu0
      %v499 = vadd.f32 0.0, %v498
      %v500 = vpop.f32.mrb[0].mxu0
      %501 = vdwg.mxu0
      %v502 = vsel %vm365, %v274, 0
      %v504 = vsel %vm365, %v275, 0
      %v506 = vsel %vm365, %v276, 0
      %v508 = vsel %vm365, %v277, 0
      %v510 = vsel %vm365, %v278, 0
      %v512 = vsel %vm365, %v279, 0
      %v514 = vsel %vm365, %v280, 0
      %v516 = vsel %vm365, %v281, 0
      %v518 = vsel %vm365, %v282, 0
      %v521 = vsel %vm393, %v231, 0
      %523 = vmatprep.subr.bf16.mxu0 0
      %524 = vmatpush1.bf16.msra.mxu0 %v521
      %525 = vmatprep.subr.bf16.mxu0 0
      %526 = vmatpush1.bf16.msra.mxu0 0
      %527 = vmatprep.subr.bf16.mxu0 0
      %528 = vmatpush1.bf16.msra.mxu0 0
      %529 = vmatprep.subr.bf16.mxu0 0
      %530 = vmatpush1.bf16.msra.mxu0 0
      %531 = vmatprep.subr.bf16.mxu0 0
      %532 = vmatpush1.bf16.msra.mxu0 0
      %533 = vmatprep.subr.bf16.mxu0 0
      %534 = vmatpush1.bf16.msra.mxu0 0
      %535 = vmatprep.subr.bf16.mxu0 0
      %536 = vmatpush1.bf16.msra.mxu0 0
      %537 = vmatprep.subr.bf16.mxu0 0
      %538 = vmatpush1.bf16.msra.mxu0 0
      %539 = vmatprep.subr.bf16.mxu0 0
      %540 = vmatpush1.bf16.msra.mxu0 0
      %541 = vmatprep.subr.bf16.mxu0 0
      %542 = vmatpush1.bf16.msra.mxu0 0
      %543 = vmatprep.subr.bf16.mxu0 0
      %544 = vmatpush1.bf16.msra.mxu0 0
      %545 = vmatprep.subr.bf16.mxu0 0
      %546 = vmatpush1.bf16.msra.mxu0 0
      %547 = vmatprep.subr.bf16.mxu0 0
      %548 = vmatpush1.bf16.msra.mxu0 0
      %549 = vmatprep.subr.bf16.mxu0 0
      %550 = vmatpush1.bf16.msra.mxu0 0
      %551 = vmatprep.subr.bf16.mxu0 0
      %552 = vmatpush1.bf16.msra.mxu0 0
      %553 = vmatprep.subr.bf16.mxu0 0
      %554 = vmatpush1.bf16.msra.mxu0 0
      %555 = vmatprep.mubr.bf16.mxu0 0
      %556 = vmatmul.mubr.bf16.gmra.mrb[0].mxu0 %v502
      %v557 = vpop.f32.mrb[0].mxu0
      %v558 = vadd.f32 %v432, %v557
      %v559 = vpop.f32.mrb[0].mxu0
      %v560 = vpop.f32.mrb[0].mxu0
      %v561 = vadd.f32 %v435, %v560
      %v562 = vpop.f32.mrb[0].mxu0
      %563 = vmatprep.mubr.bf16.mxu0 0
      %564 = vmatmul.mubr.bf16.gmra.mrb[0].mxu0 %v504
      %v565 = vpop.f32.mrb[0].mxu0
      %v566 = vadd.f32 %v440, %v565
      %v567 = vpop.f32.mrb[0].mxu0
      %v568 = vpop.f32.mrb[0].mxu0
      %v569 = vadd.f32 %v443, %v568
      %v570 = vpop.f32.mrb[0].mxu0
      %571 = vmatprep.mubr.bf16.mxu0 0
      %572 = vmatmul.mubr.bf16.gmra.mrb[0].mxu0 %v506
      %v573 = vpop.f32.mrb[0].mxu0
      %v574 = vadd.f32 %v448, %v573
      %v575 = vpop.f32.mrb[0].mxu0
      %v576 = vpop.f32.mrb[0].mxu0
      %v577 = vadd.f32 %v451, %v576
      %v578 = vpop.f32.mrb[0].mxu0
      %579 = vmatprep.mubr.bf16.mxu0 0
      %580 = vmatmul.mubr.bf16.gmra.mrb[0].mxu0 %v508
      %v581 = vpop.f32.mrb[0].mxu0
      %v582 = vadd.f32 %v456, %v581
      %v583 = vpop.f32.mrb[0].mxu0
      %v584 = vpop.f32.mrb[0].mxu0
      %v585 = vadd.f32 %v459, %v584
      %v586 = vpop.f32.mrb[0].mxu0
      %587 = vmatprep.mubr.bf16.mxu0 0
      %588 = vmatmul.mubr.bf16.gmra.mrb[0].mxu0 %v510
      %v589 = vpop.f32.mrb[0].mxu0
      %v590 = vadd.f32 %v464, %v589
      %v591 = vpop.f32.mrb[0].mxu0
      %v592 = vpop.f32.mrb[0].mxu0
      %v593 = vadd.f32 %v467, %v592
      %v594 = vpop.f32.mrb[0].mxu0
      %595 = vmatprep.mubr.bf16.mxu0 0
      %596 = vmatmul.mubr.bf16.gmra.mrb[0].mxu0 %v512
      %v597 = vpop.f32.mrb[0].mxu0
      %v598 = vadd.f32 %v472, %v597
      %v599 = vpop.f32.mrb[0].mxu0
      %v600 = vpop.f32.mrb[0].mxu0
      %v601 = vadd.f32 %v475, %v600
      %v602 = vpop.f32.mrb[0].mxu0
      %603 = vmatprep.mubr.bf16.mxu0 0
      %604 = vmatmul.mubr.bf16.gmra.mrb[0].mxu0 %v514
      %v605 = vpop.f32.mrb[0].mxu0
      %v606 = vadd.f32 %v480, %v605
      %v607 = vpop.f32.mrb[0].mxu0
      %v608 = vpop.f32.mrb[0].mxu0
      %v609 = vadd.f32 %v483, %v608
      %v610 = vpop.f32.mrb[0].mxu0
      %611 = vmatprep.mubr.bf16.mxu0 0
      %612 = vmatmul.mubr.bf16.gmra.mrb[0].mxu0 %v516
      %v613 = vpop.f32.mrb[0].mxu0
      %v614 = vadd.f32 %v488, %v613
      %v615 = vpop.f32.mrb[0].mxu0
      %v616 = vpop.f32.mrb[0].mxu0
      %v617 = vadd.f32 %v491, %v616
      %v618 = vpop.f32.mrb[0].mxu0
      %619 = vmatprep.mubr.bf16.mxu0 0
      %620 = vmatmul.mubr.bf16.gmra.mrb[0].mxu0 %v518
      %v621 = vpop.f32.mrb[0].mxu0
      %v622 = vadd.f32 %v496, %v621
      %v623 = vpop.f32.mrb[0].mxu0
      %v624 = vpop.f32.mrb[0].mxu0
      %v625 = vadd.f32 %v499, %v624
      %v626 = vpop.f32.mrb[0].mxu0
      %627 = vdwg.mxu0
      %vm628 = vcmask 1046528
      %v629 = vrot.slane %v274, 1
      %v630 = vrot.slane %v275, 1
      %v631 = vsel %vm628, %v629, %v630
      %v632 = vrot.slane %v276, 1
      %v633 = vsel %vm628, %v630, %v632
      %v634 = vrot.slane %v277, 1
      %v635 = vsel %vm628, %v632, %v634
      %v636 = vrot.slane %v278, 1
      %v637 = vsel %vm628, %v634, %v636
      %v638 = vrot.slane %v279, 1
      %v639 = vsel %vm628, %v636, %v638
      %v640 = vrot.slane %v280, 1
      %v641 = vsel %vm628, %v638, %v640
      %v642 = vrot.slane %v281, 1
      %v643 = vsel %vm628, %v640, %v642
      %v644 = vrot.slane %v282, 1
      %v645 = vsel %vm628, %v642, %v644
      %v646 = vrot.slane %v283, 1
      %v647 = vsel %vm628, %v644, %v646
      %v649 = vsel %vm365, %v631, 0
      %v652 = vsel %vm365, %v633, 0
      %v655 = vsel %vm365, %v635, 0
      %v658 = vsel %vm365, %v637, 0
      %v661 = vsel %vm365, %v639, 0
      %v664 = vsel %vm365, %v641, 0
      %v667 = vsel %vm365, %v643, 0
      %v670 = vsel %vm365, %v645, 0
      %v673 = vsel %vm365, %v647, 0
      %v676 = vsel %vm393, %v232, 0
      %678 = vmatprep.subr.bf16.mxu0 0
      %679 = vmatpush1.bf16.msra.mxu0 %v676
      %680 = vmatprep.subr.bf16.mxu0 0
      %681 = vmatpush1.bf16.msra.mxu0 0
      %682 = vmatprep.subr.bf16.mxu0 0
      %683 = vmatpush1.bf16.msra.mxu0 0
      %684 = vmatprep.subr.bf16.mxu0 0
      %685 = vmatpush1.bf16.msra.mxu0 0
      %686 = vmatprep.subr.bf16.mxu0 0
      %687 = vmatpush1.bf16.msra.mxu0 0
      %688 = vmatprep.subr.bf16.mxu0 0
      %689 = vmatpush1.bf16.msra.mxu0 0
      %690 = vmatprep.subr.bf16.mxu0 0
      %691 = vmatpush1.bf16.msra.mxu0 0
      %692 = vmatprep.subr.bf16.mxu0 0
      %693 = vmatpush1.bf16.msra.mxu0 0
      %694 = vmatprep.subr.bf16.mxu0 0
      %695 = vmatpush1.bf16.msra.mxu0 0
      %696 = vmatprep.subr.bf16.mxu0 0
      %697 = vmatpush1.bf16.msra.mxu0 0
      %698 = vmatprep.subr.bf16.mxu0 0
      %699 = vmatpush1.bf16.msra.mxu0 0
      %700 = vmatprep.subr.bf16.mxu0 0
      %701 = vmatpush1.bf16.msra.mxu0 0
      %702 = vmatprep.subr.bf16.mxu0 0
      %703 = vmatpush1.bf16.msra.mxu0 0
      %704 = vmatprep.subr.bf16.mxu0 0
      %705 = vmatpush1.bf16.msra.mxu0 0
      %706 = vmatprep.subr.bf16.mxu0 0
      %707 = vmatpush1.bf16.msra.mxu0 0
      %708 = vmatprep.subr.bf16.mxu0 0
      %709 = vmatpush1.bf16.msra.mxu0 0
      %710 = vmatprep.mubr.bf16.mxu0 0
      %711 = vmatmul.mubr.bf16.gmra.mrb[0].mxu0 %v649
      %v712 = vpop.f32.mrb[0].mxu0
      %v713 = vadd.f32 0.0, %v712
      %v714 = vpop.f32.mrb[0].mxu0
      %v715 = vpop.f32.mrb[0].mxu0
      %v716 = vadd.f32 0.0, %v715
      %v717 = vpop.f32.mrb[0].mxu0
      %718 = vmatprep.mubr.bf16.mxu0 0
      %719 = vmatmul.mubr.bf16.gmra.mrb[0].mxu0 %v652
      %v720 = vpop.f32.mrb[0].mxu0
      %v721 = vadd.f32 0.0, %v720
      %v722 = vpop.f32.mrb[0].mxu0
      %v723 = vpop.f32.mrb[0].mxu0
      %v724 = vadd.f32 0.0, %v723
      %v725 = vpop.f32.mrb[0].mxu0
      %726 = vmatprep.mubr.bf16.mxu0 0
      %727 = vmatmul.mubr.bf16.gmra.mrb[0].mxu0 %v655
      %v728 = vpop.f32.mrb[0].mxu0
      %v729 = vadd.f32 0.0, %v728
      %v730 = vpop.f32.mrb[0].mxu0
      %v731 = vpop.f32.mrb[0].mxu0
      %v732 = vadd.f32 0.0, %v731
      %v733 = vpop.f32.mrb[0].mxu0
      %734 = vmatprep.mubr.bf16.mxu0 0
      %735 = vmatmul.mubr.bf16.gmra.mrb[0].mxu0 %v658
      %v736 = vpop.f32.mrb[0].mxu0
      %v737 = vadd.f32 0.0, %v736
      %v738 = vpop.f32.mrb[0].mxu0
      %v739 = vpop.f32.mrb[0].mxu0
      %v740 = vadd.f32 0.0, %v739
      %v741 = vpop.f32.mrb[0].mxu0
      %742 = vmatprep.mubr.bf16.mxu0 0
      %743 = vmatmul.mubr.bf16.gmra.mrb[0].mxu0 %v661
      %v744 = vpop.f32.mrb[0].mxu0
      %v745 = vadd.f32 0.0, %v744
      %v746 = vpop.f32.mrb[0].mxu0
      %v747 = vpop.f32.mrb[0].mxu0
      %v748 = vadd.f32 0.0, %v747
      %v749 = vpop.f32.mrb[0].mxu0
      %750 = vmatprep.mubr.bf16.mxu0 0
      %751 = vmatmul.mubr.bf16.gmra.mrb[0].mxu0 %v664
      %v752 = vpop.f32.mrb[0].mxu0
      %v753 = vadd.f32 0.0, %v752
      %v754 = vpop.f32.mrb[0].mxu0
      %v755 = vpop.f32.mrb[0].mxu0
      %v756 = vadd.f32 0.0, %v755
      %v757 = vpop.f32.mrb[0].mxu0
      %758 = vmatprep.mubr.bf16.mxu0 0
      %759 = vmatmul.mubr.bf16.gmra.mrb[0].mxu0 %v667
      %v760 = vpop.f32.mrb[0].mxu0
      %v761 = vadd.f32 0.0, %v760
      %v762 = vpop.f32.mrb[0].mxu0
      %v763 = vpop.f32.mrb[0].mxu0
      %v764 = vadd.f32 0.0, %v763
      %v765 = vpop.f32.mrb[0].mxu0
      %766 = vmatprep.mubr.bf16.mxu0 0
      %767 = vmatmul.mubr.bf16.gmra.mrb[0].mxu0 %v670
      %v768 = vpop.f32.mrb[0].mxu0
      %v769 = vadd.f32 0.0, %v768
      %v770 = vpop.f32.mrb[0].mxu0
      %v771 = vpop.f32.mrb[0].mxu0
      %v772 = vadd.f32 0.0, %v771
      %v773 = vpop.f32.mrb[0].mxu0
      %774 = vmatprep.mubr.bf16.mxu0 0
      %775 = vmatmul.mubr.bf16.gmra.mrb[0].mxu0 %v673
      %v776 = vpop.f32.mrb[0].mxu0
      %v777 = vadd.f32 0.0, %v776
      %v778 = vpop.f32.mrb[0].mxu0
      %v779 = vpop.f32.mrb[0].mxu0
      %v780 = vadd.f32 0.0, %v779
      %v781 = vpop.f32.mrb[0].mxu0
      %782 = vdwg.mxu0
      %v783 = vadd.f32 %v558, %v713
      %v784 = vadd.f32 %v561, %v716
      %v785 = vadd.f32 %v566, %v721
      %v786 = vadd.f32 %v569, %v724
      %v787 = vadd.f32 %v574, %v729
      %v788 = vadd.f32 %v577, %v732
      %v789 = vadd.f32 %v582, %v737
      %v790 = vadd.f32 %v585, %v740
      %v791 = vadd.f32 %v590, %v745
      %v792 = vadd.f32 %v593, %v748
      %v793 = vadd.f32 %v598, %v753
      %v794 = vadd.f32 %v601, %v756
      %v795 = vadd.f32 %v606, %v761
      %v796 = vadd.f32 %v609, %v764
      %v797 = vadd.f32 %v614, %v769
      %v798 = vadd.f32 %v617, %v772
      %v799 = vadd.f32 %v622, %v777
      %v800 = vadd.f32 %v625, %v780
      %v803 = vunpack.c.l.b16 %v227
      %v804 = vunpack.c.l.b16 %v228
      %v805 = vpack.c.b16 %v803, %v273
      %v806 = vpack.c.b16 %v804, %v804
      %v807 = vrot.slane %v805, 1
      %v808 = vsel %vm628, %v644, %v807
      %v809 = vrot.slane %v806, 1
      %v810 = vsel %vm628, %v807, %v809
      %v812 = vunpack.c.l.b16 %v232
      %v813 = vpack.c.b16 %v812, %v812
      %v814 = vrot.slane %v813, 2
      %v816 = vsel %vm365, %v808, 0
      %v819 = vsel %vm365, %v810, 0
      %v822 = vsel %vm393, %v814, 0
      %824 = vmatprep.subr.bf16.mxu0 0
      %825 = vmatpush1.bf16.msra.mxu0 %v822
      %826 = vmatprep.subr.bf16.mxu0 0
      %827 = vmatpush1.bf16.msra.mxu0 0
      %828 = vmatprep.subr.bf16.mxu0 0
      %829 = vmatpush1.bf16.msra.mxu0 0
      %830 = vmatprep.subr.bf16.mxu0 0
      %831 = vmatpush1.bf16.msra.mxu0 0
      %832 = vmatprep.subr.bf16.mxu0 0
      %833 = vmatpush1.bf16.msra.mxu0 0
      %834 = vmatprep.subr.bf16.mxu0 0
      %835 = vmatpush1.bf16.msra.mxu0 0
      %836 = vmatprep.subr.bf16.mxu0 0
      %837 = vmatpush1.bf16.msra.mxu0 0
      %838 = vmatprep.subr.bf16.mxu0 0
      %839 = vmatpush1.bf16.msra.mxu0 0
      %840 = vmatprep.subr.bf16.mxu0 0
      %841 = vmatpush1.bf16.msra.mxu0 0
      %842 = vmatprep.subr.bf16.mxu0 0
      %843 = vmatpush1.bf16.msra.mxu0 0
      %844 = vmatprep.subr.bf16.mxu0 0
      %845 = vmatpush1.bf16.msra.mxu0 0
      %846 = vmatprep.subr.bf16.mxu0 0
      %847 = vmatpush1.bf16.msra.mxu0 0
      %848 = vmatprep.subr.bf16.mxu0 0
      %849 = vmatpush1.bf16.msra.mxu0 0
      %850 = vmatprep.subr.bf16.mxu0 0
      %851 = vmatpush1.bf16.msra.mxu0 0
      %852 = vmatprep.subr.bf16.mxu0 0
      %853 = vmatpush1.bf16.msra.mxu0 0
      %854 = vmatprep.subr.bf16.mxu0 0
      %855 = vmatpush1.bf16.msra.mxu0 0
      %856 = vmatprep.mubr.bf16.mxu0 0
      %857 = vmatmul.mubr.bf16.gmra.mrb[0].mxu0 %v652
      %v858 = vpop.f32.mrb[0].mxu0
      %v859 = vadd.f32 0.0, %v858
      %v860 = vpop.f32.mrb[0].mxu0
      %v861 = vpop.f32.mrb[0].mxu0
      %v862 = vadd.f32 0.0, %v861
      %v863 = vpop.f32.mrb[0].mxu0
      %864 = vmatprep.mubr.bf16.mxu0 0
      %865 = vmatmul.mubr.bf16.gmra.mrb[0].mxu0 %v655
      %v866 = vpop.f32.mrb[0].mxu0
      %v867 = vadd.f32 0.0, %v866
      %v868 = vpop.f32.mrb[0].mxu0
      %v869 = vpop.f32.mrb[0].mxu0
      %v870 = vadd.f32 0.0, %v869
      %v871 = vpop.f32.mrb[0].mxu0
      %872 = vmatprep.mubr.bf16.mxu0 0
      %873 = vmatmul.mubr.bf16.gmra.mrb[0].mxu0 %v658
      %v874 = vpop.f32.mrb[0].mxu0
      %v875 = vadd.f32 0.0, %v874
      %v876 = vpop.f32.mrb[0].mxu0
      %v877 = vpop.f32.mrb[0].mxu0
      %v878 = vadd.f32 0.0, %v877
      %v879 = vpop.f32.mrb[0].mxu0
      %880 = vmatprep.mubr.bf16.mxu0 0
      %881 = vmatmul.mubr.bf16.gmra.mrb[0].mxu0 %v661
      %v882 = vpop.f32.mrb[0].mxu0
      %v883 = vadd.f32 0.0, %v882
      %v884 = vpop.f32.mrb[0].mxu0
      %v885 = vpop.f32.mrb[0].mxu0
      %v886 = vadd.f32 0.0, %v885
      %v887 = vpop.f32.mrb[0].mxu0
      %888 = vmatprep.mubr.bf16.mxu0 0
      %889 = vmatmul.mubr.bf16.gmra.mrb[0].mxu0 %v664
      %v890 = vpop.f32.mrb[0].mxu0
      %v891 = vadd.f32 0.0, %v890
      %v892 = vpop.f32.mrb[0].mxu0
      %v893 = vpop.f32.mrb[0].mxu0
      %v894 = vadd.f32 0.0, %v893
      %v895 = vpop.f32.mrb[0].mxu0
      %896 = vmatprep.mubr.bf16.mxu0 0
      %897 = vmatmul.mubr.bf16.gmra.mrb[0].mxu0 %v667
      %v898 = vpop.f32.mrb[0].mxu0
      %v899 = vadd.f32 0.0, %v898
      %v900 = vpop.f32.mrb[0].mxu0
      %v901 = vpop.f32.mrb[0].mxu0
      %v902 = vadd.f32 0.0, %v901
      %v903 = vpop.f32.mrb[0].mxu0
      %904 = vmatprep.mubr.bf16.mxu0 0
      %905 = vmatmul.mubr.bf16.gmra.mrb[0].mxu0 %v670
      %v906 = vpop.f32.mrb[0].mxu0
      %v907 = vadd.f32 0.0, %v906
      %v908 = vpop.f32.mrb[0].mxu0
      %v909 = vpop.f32.mrb[0].mxu0
      %v910 = vadd.f32 0.0, %v909
      %v911 = vpop.f32.mrb[0].mxu0
      %912 = vmatprep.mubr.bf16.mxu0 0
      %913 = vmatmul.mubr.bf16.gmra.mrb[0].mxu0 %v816
      %v914 = vpop.f32.mrb[0].mxu0
      %v915 = vadd.f32 0.0, %v914
      %v916 = vpop.f32.mrb[0].mxu0
      %v917 = vpop.f32.mrb[0].mxu0
      %v918 = vadd.f32 0.0, %v917
      %v919 = vpop.f32.mrb[0].mxu0
      %920 = vmatprep.mubr.bf16.mxu0 0
      %921 = vmatmul.mubr.bf16.gmra.mrb[0].mxu0 %v819
      %v922 = vpop.f32.mrb[0].mxu0
      %v923 = vadd.f32 0.0, %v922
      %v924 = vpop.f32.mrb[0].mxu0
      %v925 = vpop.f32.mrb[0].mxu0
      %v926 = vadd.f32 0.0, %v925
      %v927 = vpop.f32.mrb[0].mxu0
      %928 = vdwg.mxu0
      %v929 = vadd.f32 %v783, %v859
      %v930 = vadd.f32 %v784, %v862
      %v931 = vadd.f32 %v785, %v867
      %v932 = vadd.f32 %v786, %v870
      %v933 = vadd.f32 %v787, %v875
      %v934 = vadd.f32 %v788, %v878
      %v935 = vadd.f32 %v789, %v883
      %v936 = vadd.f32 %v790, %v886
      %v937 = vadd.f32 %v791, %v891
      %v938 = vadd.f32 %v792, %v894
      %v939 = vadd.f32 %v793, %v899
      %v940 = vadd.f32 %v794, %v902
      %v941 = vadd.f32 %v795, %v907
      %v942 = vadd.f32 %v796, %v910
      %v943 = vadd.f32 %v797, %v915
      %v944 = vadd.f32 %v798, %v918
      %v945 = vadd.f32 %v799, %v923
      %v946 = vadd.f32 %v800, %v926
      %vm947 = vsmask.f32 6400
      %v948 = vrot.slane %v297, 1
      %v949 = vrot.slane %v293, 2
      %v950 = vor.u32 %v948, %v949
      %v951 = vrot.slane %v305, 1
      %v952 = vrot.slane %v301, 2
      %v953 = vor.u32 %v951, %v952
      %v954 = vsel %vm947, %v950, %v953
      %v955 = vrot.slane %v313, 1
      %v956 = vrot.slane %v309, 2
      %v957 = vor.u32 %v955, %v956
      %v958 = vsel %vm947, %v953, %v957
      %v959 = vrot.slane %v321, 1
      %v960 = vrot.slane %v317, 2
      %v961 = vor.u32 %v959, %v960
      %v962 = vsel %vm947, %v957, %v961
      %v963 = vrot.slane %v329, 1
      %v964 = vrot.slane %v325, 2
      %v965 = vor.u32 %v963, %v964
      %v966 = vsel %vm947, %v961, %v965
      %v967 = vrot.slane %v337, 1
      %v968 = vrot.slane %v333, 2
      %v969 = vor.u32 %v967, %v968
      %v970 = vsel %vm947, %v965, %v969
      %v971 = vrot.slane %v345, 1
      %v972 = vrot.slane %v341, 2
      %v973 = vor.u32 %v971, %v972
      %v974 = vsel %vm947, %v969, %v973
      %v975 = vrot.slane %v353, 1
      %v976 = vrot.slane %v349, 2
      %v977 = vor.u32 %v975, %v976
      %v978 = vsel %vm947, %v973, %v977
      %v980 = vshrl.u32 %v805, 16
      %v982 = vrot.slane %v980, 1
      %v983 = vshll.u32 %v805, 16
      %v985 = vrot.slane %v983, 2
      %v986 = vor.u32 %v982, %v985
      %v987 = vsel %vm947, %v977, %v986
      %v989 = vshrl.u32 %v806, 16
      %v991 = vrot.slane %v989, 1
      %v992 = vshll.u32 %v806, 16
      %v994 = vrot.slane %v992, 2
      %v995 = vor.u32 %v991, %v994
      %v996 = vsel %vm947, %v986, %v995
      %v998 = vsel %vm365, %v954, 0
      %v1001 = vsel %vm365, %v958, 0
      %v1004 = vsel %vm365, %v962, 0
      %v1007 = vsel %vm365, %v966, 0
      %v1010 = vsel %vm365, %v970, 0
      %v1013 = vsel %vm365, %v974, 0
      %v1016 = vsel %vm365, %v978, 0
      %v1019 = vsel %vm365, %v987, 0
      %v1022 = vsel %vm365, %v996, 0
      %v1025 = vsel %vm393, %v233, 0
      %1027 = vmatprep.subr.bf16.mxu0 0
      %1028 = vmatpush1.bf16.msra.mxu0 %v1025
      %1029 = vmatprep.subr.bf16.mxu0 0
      %1030 = vmatpush1.bf16.msra.mxu0 0
      %1031 = vmatprep.subr.bf16.mxu0 0
      %1032 = vmatpush1.bf16.msra.mxu0 0
      %1033 = vmatprep.subr.bf16.mxu0 0
      %1034 = vmatpush1.bf16.msra.mxu0 0
      %1035 = vmatprep.subr.bf16.mxu0 0
      %1036 = vmatpush1.bf16.msra.mxu0 0
      %1037 = vmatprep.subr.bf16.mxu0 0
      %1038 = vmatpush1.bf16.msra.mxu0 0
      %1039 = vmatprep.subr.bf16.mxu0 0
      %1040 = vmatpush1.bf16.msra.mxu0 0
      %1041 = vmatprep.subr.bf16.mxu0 0
      %1042 = vmatpush1.bf16.msra.mxu0 0
      %1043 = vmatprep.subr.bf16.mxu0 0
      %1044 = vmatpush1.bf16.msra.mxu0 0
      %1045 = vmatprep.subr.bf16.mxu0 0
      %1046 = vmatpush1.bf16.msra.mxu0 0
      %1047 = vmatprep.subr.bf16.mxu0 0
      %1048 = vmatpush1.bf16.msra.mxu0 0
      %1049 = vmatprep.subr.bf16.mxu0 0
      %1050 = vmatpush1.bf16.msra.mxu0 0
      %1051 = vmatprep.subr.bf16.mxu0 0
      %1052 = vmatpush1.bf16.msra.mxu0 0
      %1053 = vmatprep.subr.bf16.mxu0 0
      %1054 = vmatpush1.bf16.msra.mxu0 0
      %1055 = vmatprep.subr.bf16.mxu0 0
      %1056 = vmatpush1.bf16.msra.mxu0 0
      %1057 = vmatprep.subr.bf16.mxu0 0
      %1058 = vmatpush1.bf16.msra.mxu0 0
      %1059 = vmatprep.mubr.bf16.mxu0 0
      %1060 = vmatmul.mubr.bf16.gmra.mrb[0].mxu0 %v998
      %v1061 = vpop.f32.mrb[0].mxu0
      %v1062 = vadd.f32 0.0, %v1061
      %v1063 = vpop.f32.mrb[0].mxu0
      %v1064 = vpop.f32.mrb[0].mxu0
      %v1065 = vadd.f32 0.0, %v1064
      %v1066 = vpop.f32.mrb[0].mxu0
      %1067 = vmatprep.mubr.bf16.mxu0 0
      %1068 = vmatmul.mubr.bf16.gmra.mrb[0].mxu0 %v1001
      %v1069 = vpop.f32.mrb[0].mxu0
      %v1070 = vadd.f32 0.0, %v1069
      %v1071 = vpop.f32.mrb[0].mxu0
      %v1072 = vpop.f32.mrb[0].mxu0
      %v1073 = vadd.f32 0.0, %v1072
      %v1074 = vpop.f32.mrb[0].mxu0
      %1075 = vmatprep.mubr.bf16.mxu0 0
      %1076 = vmatmul.mubr.bf16.gmra.mrb[0].mxu0 %v1004
      %v1077 = vpop.f32.mrb[0].mxu0
      %v1078 = vadd.f32 0.0, %v1077
      %v1079 = vpop.f32.mrb[0].mxu0
      %v1080 = vpop.f32.mrb[0].mxu0
      %v1081 = vadd.f32 0.0, %v1080
      %v1082 = vpop.f32.mrb[0].mxu0
      %1083 = vmatprep.mubr.bf16.mxu0 0
      %1084 = vmatmul.mubr.bf16.gmra.mrb[0].mxu0 %v1007
      %v1085 = vpop.f32.mrb[0].mxu0
      %v1086 = vadd.f32 0.0, %v1085
      %v1087 = vpop.f32.mrb[0].mxu0
      %v1088 = vpop.f32.mrb[0].mxu0
      %v1089 = vadd.f32 0.0, %v1088
      %v1090 = vpop.f32.mrb[0].mxu0
      %1091 = vmatprep.mubr.bf16.mxu0 0
      %1092 = vmatmul.mubr.bf16.gmra.mrb[0].mxu0 %v1010
      %v1093 = vpop.f32.mrb[0].mxu0
      %v1094 = vadd.f32 0.0, %v1093
      %v1095 = vpop.f32.mrb[0].mxu0
      %v1096 = vpop.f32.mrb[0].mxu0
      %v1097 = vadd.f32 0.0, %v1096
      %v1098 = vpop.f32.mrb[0].mxu0
      %1099 = vmatprep.mubr.bf16.mxu0 0
      %1100 = vmatmul.mubr.bf16.gmra.mrb[0].mxu0 %v1013
      %v1101 = vpop.f32.mrb[0].mxu0
      %v1102 = vadd.f32 0.0, %v1101
      %v1103 = vpop.f32.mrb[0].mxu0
      %v1104 = vpop.f32.mrb[0].mxu0
      %v1105 = vadd.f32 0.0, %v1104
      %v1106 = vpop.f32.mrb[0].mxu0
      %1107 = vmatprep.mubr.bf16.mxu0 0
      %1108 = vmatmul.mubr.bf16.gmra.mrb[0].mxu0 %v1016
      %v1109 = vpop.f32.mrb[0].mxu0
      %v1110 = vadd.f32 0.0, %v1109
      %v1111 = vpop.f32.mrb[0].mxu0
      %v1112 = vpop.f32.mrb[0].mxu0
      %v1113 = vadd.f32 0.0, %v1112
      %v1114 = vpop.f32.mrb[0].mxu0
      %1115 = vmatprep.mubr.bf16.mxu0 0
      %1116 = vmatmul.mubr.bf16.gmra.mrb[0].mxu0 %v1019
      %v1117 = vpop.f32.mrb[0].mxu0
      %v1118 = vadd.f32 0.0, %v1117
      %v1119 = vpop.f32.mrb[0].mxu0
      %v1120 = vpop.f32.mrb[0].mxu0
      %v1121 = vadd.f32 0.0, %v1120
      %v1122 = vpop.f32.mrb[0].mxu0
      %1123 = vmatprep.mubr.bf16.mxu0 0
      %1124 = vmatmul.mubr.bf16.gmra.mrb[0].mxu0 %v1022
      %v1125 = vpop.f32.mrb[0].mxu0
      %v1126 = vadd.f32 0.0, %v1125
      %v1127 = vpop.f32.mrb[0].mxu0
      %v1128 = vpop.f32.mrb[0].mxu0
      %v1129 = vadd.f32 0.0, %v1128
      %v1130 = vpop.f32.mrb[0].mxu0
      %1131 = vdwg.mxu0
      %v1132 = vadd.f32 %v929, %v1062
      %v1133 = vadd.f32 %v930, %v1065
      %v1134 = vadd.f32 %v931, %v1070
      %v1135 = vadd.f32 %v932, %v1073
      %v1136 = vadd.f32 %v933, %v1078
      %v1137 = vadd.f32 %v934, %v1081
      %v1138 = vadd.f32 %v935, %v1086
      %v1139 = vadd.f32 %v936, %v1089
      %v1140 = vadd.f32 %v937, %v1094
      %v1141 = vadd.f32 %v938, %v1097
      %v1142 = vadd.f32 %v939, %v1102
      %v1143 = vadd.f32 %v940, %v1105
      %v1144 = vadd.f32 %v941, %v1110
      %v1145 = vadd.f32 %v942, %v1113
      %v1146 = vadd.f32 %v943, %v1118
      %v1147 = vadd.f32 %v944, %v1121
      %v1148 = vadd.f32 %v945, %v1126
      %v1149 = vadd.f32 %v946, %v1129
      %vm1150 = vcmask 1045504
      %v1151 = vrot.slane %v275, 2
      %v1152 = vrot.slane %v276, 2
      %v1153 = vsel %vm1150, %v1151, %v1152
      %v1154 = vrot.slane %v277, 2
      %v1155 = vsel %vm1150, %v1152, %v1154
      %v1156 = vrot.slane %v278, 2
      %v1157 = vsel %vm1150, %v1154, %v1156
      %v1158 = vrot.slane %v279, 2
      %v1159 = vsel %vm1150, %v1156, %v1158
      %v1160 = vrot.slane %v280, 2
      %v1161 = vsel %vm1150, %v1158, %v1160
      %v1162 = vrot.slane %v281, 2
      %v1163 = vsel %vm1150, %v1160, %v1162
      %v1164 = vrot.slane %v282, 2
      %v1165 = vsel %vm1150, %v1162, %v1164
      %v1166 = vrot.slane %v805, 2
      %v1167 = vsel %vm1150, %v1164, %v1166
      %v1168 = vrot.slane %v806, 2
      %v1169 = vsel %vm1150, %v1166, %v1168
      %v1171 = vunpack.c.l.b16 %v233
      %v1172 = vpack.c.b16 %v1171, %v1171
      %v1173 = vrot.slane %v1172, 2
      %v1175 = vsel %vm365, %v1153, 0
      %v1178 = vsel %vm365, %v1155, 0
      %v1181 = vsel %vm365, %v1157, 0
      %v1184 = vsel %vm365, %v1159, 0
      %v1187 = vsel %vm365, %v1161, 0
      %v1190 = vsel %vm365, %v1163, 0
      %v1193 = vsel %vm365, %v1165, 0
      %v1196 = vsel %vm365, %v1167, 0
      %v1199 = vsel %vm365, %v1169, 0
      %v1202 = vsel %vm393, %v1173, 0
      %1204 = vmatprep.subr.bf16.mxu0 0
      %1205 = vmatpush1.bf16.msra.mxu0 %v1202
      %1206 = vmatprep.subr.bf16.mxu0 0
      %1207 = vmatpush1.bf16.msra.mxu0 0
      %1208 = vmatprep.subr.bf16.mxu0 0
      %1209 = vmatpush1.bf16.msra.mxu0 0
      %1210 = vmatprep.subr.bf16.mxu0 0
      %1211 = vmatpush1.bf16.msra.mxu0 0
      %1212 = vmatprep.subr.bf16.mxu0 0
      %1213 = vmatpush1.bf16.msra.mxu0 0
      %1214 = vmatprep.subr.bf16.mxu0 0
      %1215 = vmatpush1.bf16.msra.mxu0 0
      %1216 = vmatprep.subr.bf16.mxu0 0
      %1217 = vmatpush1.bf16.msra.mxu0 0
      %1218 = vmatprep.subr.bf16.mxu0 0
      %1219 = vmatpush1.bf16.msra.mxu0 0
      %1220 = vmatprep.subr.bf16.mxu0 0
      %1221 = vmatpush1.bf16.msra.mxu0 0
      %1222 = vmatprep.subr.bf16.mxu0 0
      %1223 = vmatpush1.bf16.msra.mxu0 0
      %1224 = vmatprep.subr.bf16.mxu0 0
      %1225 = vmatpush1.bf16.msra.mxu0 0
      %1226 = vmatprep.subr.bf16.mxu0 0
      %1227 = vmatpush1.bf16.msra.mxu0 0
      %1228 = vmatprep.subr.bf16.mxu0 0
      %1229 = vmatpush1.bf16.msra.mxu0 0
      %1230 = vmatprep.subr.bf16.mxu0 0
      %1231 = vmatpush1.bf16.msra.mxu0 0
      %1232 = vmatprep.subr.bf16.mxu0 0
      %1233 = vmatpush1.bf16.msra.mxu0 0
      %1234 = vmatprep.subr.bf16.mxu0 0
      %1235 = vmatpush1.bf16.msra.mxu0 0
      %1236 = vmatprep.mubr.bf16.mxu0 0
      %1237 = vmatmul.mubr.bf16.gmra.mrb[0].mxu0 %v1175
      %v1238 = vpop.f32.mrb[0].mxu0
      %v1239 = vadd.f32 0.0, %v1238
      %v1240 = vpop.f32.mrb[0].mxu0
      %v1241 = vpop.f32.mrb[0].mxu0
      %v1242 = vadd.f32 0.0, %v1241
      %v1243 = vpop.f32.mrb[0].mxu0
      %1244 = vmatprep.mubr.bf16.mxu0 0
      %1245 = vmatmul.mubr.bf16.gmra.mrb[0].mxu0 %v1178
      %v1246 = vpop.f32.mrb[0].mxu0
      %v1247 = vadd.f32 0.0, %v1246
      %v1248 = vpop.f32.mrb[0].mxu0
      %v1249 = vpop.f32.mrb[0].mxu0
      %v1250 = vadd.f32 0.0, %v1249
      %v1251 = vpop.f32.mrb[0].mxu0
      %1252 = vmatprep.mubr.bf16.mxu0 0
      %1253 = vmatmul.mubr.bf16.gmra.mrb[0].mxu0 %v1181
      %v1254 = vpop.f32.mrb[0].mxu0
      %v1255 = vadd.f32 0.0, %v1254
      %v1256 = vpop.f32.mrb[0].mxu0
      %v1257 = vpop.f32.mrb[0].mxu0
      %v1258 = vadd.f32 0.0, %v1257
      %v1259 = vpop.f32.mrb[0].mxu0
      %1260 = vmatprep.mubr.bf16.mxu0 0
      %1261 = vmatmul.mubr.bf16.gmra.mrb[0].mxu0 %v1184
      %v1262 = vpop.f32.mrb[0].mxu0
      %v1263 = vadd.f32 0.0, %v1262
      %v1264 = vpop.f32.mrb[0].mxu0
      %v1265 = vpop.f32.mrb[0].mxu0
      %v1266 = vadd.f32 0.0, %v1265
      %v1267 = vpop.f32.mrb[0].mxu0
      %1268 = vmatprep.mubr.bf16.mxu0 0
      %1269 = vmatmul.mubr.bf16.gmra.mrb[0].mxu0 %v1187
      %v1270 = vpop.f32.mrb[0].mxu0
      %v1271 = vadd.f32 0.0, %v1270
      %v1272 = vpop.f32.mrb[0].mxu0
      %v1273 = vpop.f32.mrb[0].mxu0
      %v1274 = vadd.f32 0.0, %v1273
      %v1275 = vpop.f32.mrb[0].mxu0
      %1276 = vmatprep.mubr.bf16.mxu0 0
      %1277 = vmatmul.mubr.bf16.gmra.mrb[0].mxu0 %v1190
      %v1278 = vpop.f32.mrb[0].mxu0
      %v1279 = vadd.f32 0.0, %v1278
      %v1280 = vpop.f32.mrb[0].mxu0
      %v1281 = vpop.f32.mrb[0].mxu0
      %v1282 = vadd.f32 0.0, %v1281
      %v1283 = vpop.f32.mrb[0].mxu0
      %1284 = vmatprep.mubr.bf16.mxu0 0
      %1285 = vmatmul.mubr.bf16.gmra.mrb[0].mxu0 %v1193
      %v1286 = vpop.f32.mrb[0].mxu0
      %v1287 = vadd.f32 0.0, %v1286
      %v1288 = vpop.f32.mrb[0].mxu0
      %v1289 = vpop.f32.mrb[0].mxu0
      %v1290 = vadd.f32 0.0, %v1289
      %v1291 = vpop.f32.mrb[0].mxu0
      %1292 = vmatprep.mubr.bf16.mxu0 0
      %1293 = vmatmul.mubr.bf16.gmra.mrb[0].mxu0 %v1196
      %v1294 = vpop.f32.mrb[0].mxu0
      %v1295 = vadd.f32 0.0, %v1294
      %v1296 = vpop.f32.mrb[0].mxu0
      %v1297 = vpop.f32.mrb[0].mxu0
      %v1298 = vadd.f32 0.0, %v1297
      %v1299 = vpop.f32.mrb[0].mxu0
      %1300 = vmatprep.mubr.bf16.mxu0 0
      %1301 = vmatmul.mubr.bf16.gmra.mrb[0].mxu0 %v1199
      %v1302 = vpop.f32.mrb[0].mxu0
      %v1303 = vadd.f32 0.0, %v1302
      %v1304 = vpop.f32.mrb[0].mxu0
      %v1305 = vpop.f32.mrb[0].mxu0
      %v1306 = vadd.f32 0.0, %v1305
      %v1307 = vpop.f32.mrb[0].mxu0
      %1308 = vdwg.mxu0
      %v1309 = vadd.f32 %v1132, %v1239
      %v1310 = vadd.f32 %v1133, %v1242
      %v1311 = vadd.f32 %v1134, %v1247
      %v1312 = vadd.f32 %v1135, %v1250
      %v1313 = vadd.f32 %v1136, %v1255
      %v1314 = vadd.f32 %v1137, %v1258
      %v1315 = vadd.f32 %v1138, %v1263
      %v1316 = vadd.f32 %v1139, %v1266
      %v1317 = vadd.f32 %v1140, %v1271
      %v1318 = vadd.f32 %v1141, %v1274
      %v1319 = vadd.f32 %v1142, %v1279
      %v1320 = vadd.f32 %v1143, %v1282
      %v1321 = vadd.f32 %v1144, %v1287
      %v1322 = vadd.f32 %v1145, %v1290
      %v1323 = vadd.f32 %v1146, %v1295
      %v1324 = vadd.f32 %v1147, %v1298
      %v1325 = vadd.f32 %v1148, %v1303
      %v1326 = vadd.f32 %v1149, %v1306
      %v1329 = vunpack.c.l.b16 %v229
      %v1330 = vunpack.c.l.b16 %v230
      %v1331 = vpack.c.b16 %v1329, %v804
      %v1332 = vpack.c.b16 %v1330, %v1330
      %v1333 = vrot.slane %v1331, 2
      %v1334 = vsel %vm1150, %v1166, %v1333
      %v1335 = vrot.slane %v1332, 2
      %v1336 = vsel %vm1150, %v1333, %v1335
      %v1338 = vsel %vm365, %v1334, 0
      %v1341 = vsel %vm365, %v1336, 0
      %v1344 = vsel %vm393, %v234, 0
      %1346 = vmatprep.subr.bf16.mxu0 0
      %1347 = vmatpush1.bf16.msra.mxu0 %v1344
      %1348 = vmatprep.subr.bf16.mxu0 0
      %1349 = vmatpush1.bf16.msra.mxu0 0
      %1350 = vmatprep.subr.bf16.mxu0 0
      %1351 = vmatpush1.bf16.msra.mxu0 0
      %1352 = vmatprep.subr.bf16.mxu0 0
      %1353 = vmatpush1.bf16.msra.mxu0 0
      %1354 = vmatprep.subr.bf16.mxu0 0
      %1355 = vmatpush1.bf16.msra.mxu0 0
      %1356 = vmatprep.subr.bf16.mxu0 0
      %1357 = vmatpush1.bf16.msra.mxu0 0
      %1358 = vmatprep.subr.bf16.mxu0 0
      %1359 = vmatpush1.bf16.msra.mxu0 0
      %1360 = vmatprep.subr.bf16.mxu0 0
      %1361 = vmatpush1.bf16.msra.mxu0 0
      %1362 = vmatprep.subr.bf16.mxu0 0
      %1363 = vmatpush1.bf16.msra.mxu0 0
      %1364 = vmatprep.subr.bf16.mxu0 0
      %1365 = vmatpush1.bf16.msra.mxu0 0
      %1366 = vmatprep.subr.bf16.mxu0 0
      %1367 = vmatpush1.bf16.msra.mxu0 0
      %1368 = vmatprep.subr.bf16.mxu0 0
      %1369 = vmatpush1.bf16.msra.mxu0 0
      %1370 = vmatprep.subr.bf16.mxu0 0
      %1371 = vmatpush1.bf16.msra.mxu0 0
      %1372 = vmatprep.subr.bf16.mxu0 0
      %1373 = vmatpush1.bf16.msra.mxu0 0
      %1374 = vmatprep.subr.bf16.mxu0 0
      %1375 = vmatpush1.bf16.msra.mxu0 0
      %1376 = vmatprep.subr.bf16.mxu0 0
      %1377 = vmatpush1.bf16.msra.mxu0 0
      %1378 = vmatprep.mubr.bf16.mxu0 0
      %1379 = vmatmul.mubr.bf16.gmra.mrb[0].mxu0 %v1178
      %v1380 = vpop.f32.mrb[0].mxu0
      %v1381 = vadd.f32 0.0, %v1380
      %v1382 = vpop.f32.mrb[0].mxu0
      %v1383 = vpop.f32.mrb[0].mxu0
      %v1384 = vadd.f32 0.0, %v1383
      %v1385 = vpop.f32.mrb[0].mxu0
      %1386 = vmatprep.mubr.bf16.mxu0 0
      %1387 = vmatmul.mubr.bf16.gmra.mrb[0].mxu0 %v1181
      %v1388 = vpop.f32.mrb[0].mxu0
      %v1389 = vadd.f32 0.0, %v1388
      %v1390 = vpop.f32.mrb[0].mxu0
      %v1391 = vpop.f32.mrb[0].mxu0
      %v1392 = vadd.f32 0.0, %v1391
      %v1393 = vpop.f32.mrb[0].mxu0
      %1394 = vmatprep.mubr.bf16.mxu0 0
      %1395 = vmatmul.mubr.bf16.gmra.mrb[0].mxu0 %v1184
      %v1396 = vpop.f32.mrb[0].mxu0
      %v1397 = vadd.f32 0.0, %v1396
      %v1398 = vpop.f32.mrb[0].mxu0
      %v1399 = vpop.f32.mrb[0].mxu0
      %v1400 = vadd.f32 0.0, %v1399
      %v1401 = vpop.f32.mrb[0].mxu0
      %1402 = vmatprep.mubr.bf16.mxu0 0
      %1403 = vmatmul.mubr.bf16.gmra.mrb[0].mxu0 %v1187
      %v1404 = vpop.f32.mrb[0].mxu0
      %v1405 = vadd.f32 0.0, %v1404
      %v1406 = vpop.f32.mrb[0].mxu0
      %v1407 = vpop.f32.mrb[0].mxu0
      %v1408 = vadd.f32 0.0, %v1407
      %v1409 = vpop.f32.mrb[0].mxu0
      %1410 = vmatprep.mubr.bf16.mxu0 0
      %1411 = vmatmul.mubr.bf16.gmra.mrb[0].mxu0 %v1190
      %v1412 = vpop.f32.mrb[0].mxu0
      %v1413 = vadd.f32 0.0, %v1412
      %v1414 = vpop.f32.mrb[0].mxu0
      %v1415 = vpop.f32.mrb[0].mxu0
      %v1416 = vadd.f32 0.0, %v1415
      %v1417 = vpop.f32.mrb[0].mxu0
      %1418 = vmatprep.mubr.bf16.mxu0 0
      %1419 = vmatmul.mubr.bf16.gmra.mrb[0].mxu0 %v1193
      %v1420 = vpop.f32.mrb[0].mxu0
      %v1421 = vadd.f32 0.0, %v1420
      %v1422 = vpop.f32.mrb[0].mxu0
      %v1423 = vpop.f32.mrb[0].mxu0
      %v1424 = vadd.f32 0.0, %v1423
      %v1425 = vpop.f32.mrb[0].mxu0
      %1426 = vmatprep.mubr.bf16.mxu0 0
      %1427 = vmatmul.mubr.bf16.gmra.mrb[0].mxu0 %v1196
      %v1428 = vpop.f32.mrb[0].mxu0
      %v1429 = vadd.f32 0.0, %v1428
      %v1430 = vpop.f32.mrb[0].mxu0
      %v1431 = vpop.f32.mrb[0].mxu0
      %v1432 = vadd.f32 0.0, %v1431
      %v1433 = vpop.f32.mrb[0].mxu0
      %1434 = vmatprep.mubr.bf16.mxu0 0
      %1435 = vmatmul.mubr.bf16.gmra.mrb[0].mxu0 %v1338
      %v1436 = vpop.f32.mrb[0].mxu0
      %v1437 = vadd.f32 0.0, %v1436
      %v1438 = vpop.f32.mrb[0].mxu0
      %v1439 = vpop.f32.mrb[0].mxu0
      %v1440 = vadd.f32 0.0, %v1439
      %v1441 = vpop.f32.mrb[0].mxu0
      %1442 = vmatprep.mubr.bf16.mxu0 0
      %1443 = vmatmul.mubr.bf16.gmra.mrb[0].mxu0 %v1341
      %v1444 = vpop.f32.mrb[0].mxu0
      %v1445 = vadd.f32 0.0, %v1444
      %v1446 = vpop.f32.mrb[0].mxu0
      %v1447 = vpop.f32.mrb[0].mxu0
      %v1448 = vadd.f32 0.0, %v1447
      %v1449 = vpop.f32.mrb[0].mxu0
      %1450 = vdwg.mxu0
      %v1451 = vadd.f32 %v1309, %v1381
      %v1452 = vadd.f32 %v1310, %v1384
      %v1453 = vadd.f32 %v1311, %v1389
      %v1454 = vadd.f32 %v1312, %v1392
      %v1455 = vadd.f32 %v1313, %v1397
      %v1456 = vadd.f32 %v1314, %v1400
      %v1457 = vadd.f32 %v1315, %v1405
      %v1458 = vadd.f32 %v1316, %v1408
      %v1459 = vadd.f32 %v1317, %v1413
      %v1460 = vadd.f32 %v1318, %v1416
      %v1461 = vadd.f32 %v1319, %v1421
      %v1462 = vadd.f32 %v1320, %v1424
      %v1463 = vadd.f32 %v1321, %v1429
      %v1464 = vadd.f32 %v1322, %v1432
      %v1465 = vadd.f32 %v1323, %v1437
      %v1466 = vadd.f32 %v1324, %v1440
      %v1467 = vadd.f32 %v1325, %v1445
      %v1468 = vadd.f32 %v1326, %v1448
      %vm1469 = vsmask.f32 5376
      %v1470 = vrot.slane %v305, 2
      %v1471 = vrot.slane %v301, 3
      %v1472 = vor.u32 %v1470, %v1471
      %v1473 = vrot.slane %v313, 2
      %v1474 = vrot.slane %v309, 3
      %v1475 = vor.u32 %v1473, %v1474
      %v1476 = vsel %vm1469, %v1472, %v1475
      %v1477 = vrot.slane %v321, 2
      %v1478 = vrot.slane %v317, 3
      %v1479 = vor.u32 %v1477, %v1478
      %v1480 = vsel %vm1469, %v1475, %v1479
      %v1481 = vrot.slane %v329, 2
      %v1482 = vrot.slane %v325, 3
      %v1483 = vor.u32 %v1481, %v1482
      %v1484 = vsel %vm1469, %v1479, %v1483
      %v1485 = vrot.slane %v337, 2
      %v1486 = vrot.slane %v333, 3
      %v1487 = vor.u32 %v1485, %v1486
      %v1488 = vsel %vm1469, %v1483, %v1487
      %v1489 = vrot.slane %v345, 2
      %v1490 = vrot.slane %v341, 3
      %v1491 = vor.u32 %v1489, %v1490
      %v1492 = vsel %vm1469, %v1487, %v1491
      %v1493 = vrot.slane %v353, 2
      %v1494 = vrot.slane %v349, 3
      %v1495 = vor.u32 %v1493, %v1494
      %v1496 = vsel %vm1469, %v1491, %v1495
      %v1497 = vrot.slane %v980, 2
      %v1498 = vrot.slane %v983, 3
      %v1499 = vor.u32 %v1497, %v1498
      %v1500 = vsel %vm1469, %v1495, %v1499
      %v1502 = vshrl.u32 %v1331, 16
      %v1504 = vrot.slane %v1502, 2
      %v1505 = vshll.u32 %v1331, 16
      %v1507 = vrot.slane %v1505, 3
      %v1508 = vor.u32 %v1504, %v1507
      %v1509 = vsel %vm1469, %v1499, %v1508
      %v1511 = vshrl.u32 %v1332, 16
      %v1513 = vrot.slane %v1511, 2
      %v1514 = vshll.u32 %v1332, 16
      %v1516 = vrot.slane %v1514, 3
      %v1517 = vor.u32 %v1513, %v1516
      %v1518 = vsel %vm1469, %v1508, %v1517
      %v1520 = vunpack.c.l.b16 %v234
      %v1521 = vpack.c.b16 %v1520, %v1520
      %v1522 = vrot.slane %v1521, 2
      %v1524 = vsel %vm365, %v1476, 0
      %v1527 = vsel %vm365, %v1480, 0
      %v1530 = vsel %vm365, %v1484, 0
      %v1533 = vsel %vm365, %v1488, 0
      %v1536 = vsel %vm365, %v1492, 0
      %v1539 = vsel %vm365, %v1496, 0
      %v1542 = vsel %vm365, %v1500, 0
      %v1545 = vsel %vm365, %v1509, 0
      %v1548 = vsel %vm365, %v1518, 0
      %v1551 = vsel %vm393, %v1522, 0
      %1553 = vmatprep.subr.bf16.mxu0 0
      %1554 = vmatpush1.bf16.msra.mxu0 %v1551
      %1555 = vmatprep.subr.bf16.mxu0 0
      %1556 = vmatpush1.bf16.msra.mxu0 0
      %1557 = vmatprep.subr.bf16.mxu0 0
      %1558 = vmatpush1.bf16.msra.mxu0 0
      %1559 = vmatprep.subr.bf16.mxu0 0
      %1560 = vmatpush1.bf16.msra.mxu0 0
      %1561 = vmatprep.subr.bf16.mxu0 0
      %1562 = vmatpush1.bf16.msra.mxu0 0
      %1563 = vmatprep.subr.bf16.mxu0 0
      %1564 = vmatpush1.bf16.msra.mxu0 0
      %1565 = vmatprep.subr.bf16.mxu0 0
      %1566 = vmatpush1.bf16.msra.mxu0 0
      %1567 = vmatprep.subr.bf16.mxu0 0
      %1568 = vmatpush1.bf16.msra.mxu0 0
      %1569 = vmatprep.subr.bf16.mxu0 0
      %1570 = vmatpush1.bf16.msra.mxu0 0
      %1571 = vmatprep.subr.bf16.mxu0 0
      %1572 = vmatpush1.bf16.msra.mxu0 0
      %1573 = vmatprep.subr.bf16.mxu0 0
      %1574 = vmatpush1.bf16.msra.mxu0 0
      %1575 = vmatprep.subr.bf16.mxu0 0
      %1576 = vmatpush1.bf16.msra.mxu0 0
      %1577 = vmatprep.subr.bf16.mxu0 0
      %1578 = vmatpush1.bf16.msra.mxu0 0
      %1579 = vmatprep.subr.bf16.mxu0 0
      %1580 = vmatpush1.bf16.msra.mxu0 0
      %1581 = vmatprep.subr.bf16.mxu0 0
      %1582 = vmatpush1.bf16.msra.mxu0 0
      %1583 = vmatprep.subr.bf16.mxu0 0
      %1584 = vmatpush1.bf16.msra.mxu0 0
      %1585 = vmatprep.mubr.bf16.mxu0 0
      %1586 = vmatmul.mubr.bf16.gmra.mrb[0].mxu0 %v1524
      %v1587 = vpop.f32.mrb[0].mxu0
      %v1588 = vadd.f32 0.0, %v1587
      %v1589 = vpop.f32.mrb[0].mxu0
      %v1590 = vpop.f32.mrb[0].mxu0
      %v1591 = vadd.f32 0.0, %v1590
      %v1592 = vpop.f32.mrb[0].mxu0
      %1593 = vmatprep.mubr.bf16.mxu0 0
      %1594 = vmatmul.mubr.bf16.gmra.mrb[0].mxu0 %v1527
      %v1595 = vpop.f32.mrb[0].mxu0
      %v1596 = vadd.f32 0.0, %v1595
      %v1597 = vpop.f32.mrb[0].mxu0
      %v1598 = vpop.f32.mrb[0].mxu0
      %v1599 = vadd.f32 0.0, %v1598
      %v1600 = vpop.f32.mrb[0].mxu0
      %1601 = vmatprep.mubr.bf16.mxu0 0
      %1602 = vmatmul.mubr.bf16.gmra.mrb[0].mxu0 %v1530
      %v1603 = vpop.f32.mrb[0].mxu0
      %v1604 = vadd.f32 0.0, %v1603
      %v1605 = vpop.f32.mrb[0].mxu0
      %v1606 = vpop.f32.mrb[0].mxu0
      %v1607 = vadd.f32 0.0, %v1606
      %v1608 = vpop.f32.mrb[0].mxu0
      %1609 = vmatprep.mubr.bf16.mxu0 0
      %1610 = vmatmul.mubr.bf16.gmra.mrb[0].mxu0 %v1533
      %v1611 = vpop.f32.mrb[0].mxu0
      %v1612 = vadd.f32 0.0, %v1611
      %v1613 = vpop.f32.mrb[0].mxu0
      %v1614 = vpop.f32.mrb[0].mxu0
      %v1615 = vadd.f32 0.0, %v1614
      %v1616 = vpop.f32.mrb[0].mxu0
      %1617 = vmatprep.mubr.bf16.mxu0 0
      %1618 = vmatmul.mubr.bf16.gmra.mrb[0].mxu0 %v1536
      %v1619 = vpop.f32.mrb[0].mxu0
      %v1620 = vadd.f32 0.0, %v1619
      %v1621 = vpop.f32.mrb[0].mxu0
      %v1622 = vpop.f32.mrb[0].mxu0
      %v1623 = vadd.f32 0.0, %v1622
      %v1624 = vpop.f32.mrb[0].mxu0
      %1625 = vmatprep.mubr.bf16.mxu0 0
      %1626 = vmatmul.mubr.bf16.gmra.mrb[0].mxu0 %v1539
      %v1627 = vpop.f32.mrb[0].mxu0
      %v1628 = vadd.f32 0.0, %v1627
      %v1629 = vpop.f32.mrb[0].mxu0
      %v1630 = vpop.f32.mrb[0].mxu0
      %v1631 = vadd.f32 0.0, %v1630
      %v1632 = vpop.f32.mrb[0].mxu0
      %1633 = vmatprep.mubr.bf16.mxu0 0
      %1634 = vmatmul.mubr.bf16.gmra.mrb[0].mxu0 %v1542
      %v1635 = vpop.f32.mrb[0].mxu0
      %v1636 = vadd.f32 0.0, %v1635
      %v1637 = vpop.f32.mrb[0].mxu0
      %v1638 = vpop.f32.mrb[0].mxu0
      %v1639 = vadd.f32 0.0, %v1638
      %v1640 = vpop.f32.mrb[0].mxu0
      %1641 = vmatprep.mubr.bf16.mxu0 0
      %1642 = vmatmul.mubr.bf16.gmra.mrb[0].mxu0 %v1545
      %v1643 = vpop.f32.mrb[0].mxu0
      %v1644 = vadd.f32 0.0, %v1643
      %v1645 = vpop.f32.mrb[0].mxu0
      %v1646 = vpop.f32.mrb[0].mxu0
      %v1647 = vadd.f32 0.0, %v1646
      %v1648 = vpop.f32.mrb[0].mxu0
      %1649 = vmatprep.mubr.bf16.mxu0 0
      %1650 = vmatmul.mubr.bf16.gmra.mrb[0].mxu0 %v1548
      %v1651 = vpop.f32.mrb[0].mxu0
      %v1652 = vadd.f32 0.0, %v1651
      %v1653 = vpop.f32.mrb[0].mxu0
      %v1654 = vpop.f32.mrb[0].mxu0
      %v1655 = vadd.f32 0.0, %v1654
      %v1656 = vpop.f32.mrb[0].mxu0
      %1657 = vdwg.mxu0
      %v1658 = vadd.f32 %v1451, %v1588
      %v1659 = vadd.f32 %v1452, %v1591
      %v1660 = vadd.f32 %v1453, %v1596
      %v1661 = vadd.f32 %v1454, %v1599
      %v1662 = vadd.f32 %v1455, %v1604
      %v1663 = vadd.f32 %v1456, %v1607
      %v1664 = vadd.f32 %v1457, %v1612
      %v1665 = vadd.f32 %v1458, %v1615
      %v1666 = vadd.f32 %v1459, %v1620
      %v1667 = vadd.f32 %v1460, %v1623
      %v1668 = vadd.f32 %v1461, %v1628
      %v1669 = vadd.f32 %v1462, %v1631
      %v1670 = vadd.f32 %v1463, %v1636
      %v1671 = vadd.f32 %v1464, %v1639
      %v1672 = vadd.f32 %v1465, %v1644
      %v1673 = vadd.f32 %v1466, %v1647
      %v1674 = vadd.f32 %v1467, %v1652
      %v1675 = vadd.f32 %v1468, %v1655
      %vm1676 = vcmask 1044480
      %v1677 = vrot.slane %v276, 3
      %v1678 = vrot.slane %v277, 3
      %v1679 = vsel %vm1676, %v1677, %v1678
      %v1680 = vrot.slane %v278, 3
      %v1681 = vsel %vm1676, %v1678, %v1680
      %v1682 = vrot.slane %v279, 3
      %v1683 = vsel %vm1676, %v1680, %v1682
      %v1684 = vrot.slane %v280, 3
      %v1685 = vsel %vm1676, %v1682, %v1684
      %v1686 = vrot.slane %v281, 3
      %v1687 = vsel %vm1676, %v1684, %v1686
      %v1688 = vrot.slane %v282, 3
      %v1689 = vsel %vm1676, %v1686, %v1688
      %v1690 = vrot.slane %v805, 3
      %v1691 = vsel %vm1676, %v1688, %v1690
      %v1692 = vrot.slane %v1331, 3
      %v1693 = vsel %vm1676, %v1690, %v1692
      %v1694 = vrot.slane %v1332, 3
      %v1695 = vsel %vm1676, %v1692, %v1694
      %v1697 = vsel %vm365, %v1679, 0
      %v1700 = vsel %vm365, %v1681, 0
      %v1703 = vsel %vm365, %v1683, 0
      %v1706 = vsel %vm365, %v1685, 0
      %v1709 = vsel %vm365, %v1687, 0
      %v1712 = vsel %vm365, %v1689, 0
      %v1715 = vsel %vm365, %v1691, 0
      %v1718 = vsel %vm365, %v1693, 0
      %v1721 = vsel %vm365, %v1695, 0
      %v1724 = vsel %vm393, %v235, 0
      %1726 = vmatprep.subr.bf16.mxu0 0
      %1727 = vmatpush1.bf16.msra.mxu0 %v1724
      %1728 = vmatprep.subr.bf16.mxu0 0
      %1729 = vmatpush1.bf16.msra.mxu0 0
      %1730 = vmatprep.subr.bf16.mxu0 0
      %1731 = vmatpush1.bf16.msra.mxu0 0
      %1732 = vmatprep.subr.bf16.mxu0 0
      %1733 = vmatpush1.bf16.msra.mxu0 0
      %1734 = vmatprep.subr.bf16.mxu0 0
      %1735 = vmatpush1.bf16.msra.mxu0 0
      %1736 = vmatprep.subr.bf16.mxu0 0
      %1737 = vmatpush1.bf16.msra.mxu0 0
      %1738 = vmatprep.subr.bf16.mxu0 0
      %1739 = vmatpush1.bf16.msra.mxu0 0
      %1740 = vmatprep.subr.bf16.mxu0 0
      %1741 = vmatpush1.bf16.msra.mxu0 0
      %1742 = vmatprep.subr.bf16.mxu0 0
      %1743 = vmatpush1.bf16.msra.mxu0 0
      %1744 = vmatprep.subr.bf16.mxu0 0
      %1745 = vmatpush1.bf16.msra.mxu0 0
      %1746 = vmatprep.subr.bf16.mxu0 0
      %1747 = vmatpush1.bf16.msra.mxu0 0
      %1748 = vmatprep.subr.bf16.mxu0 0
      %1749 = vmatpush1.bf16.msra.mxu0 0
      %1750 = vmatprep.subr.bf16.mxu0 0
      %1751 = vmatpush1.bf16.msra.mxu0 0
      %1752 = vmatprep.subr.bf16.mxu0 0
      %1753 = vmatpush1.bf16.msra.mxu0 0
      %1754 = vmatprep.subr.bf16.mxu0 0
      %1755 = vmatpush1.bf16.msra.mxu0 0
      %1756 = vmatprep.subr.bf16.mxu0 0
      %1757 = vmatpush1.bf16.msra.mxu0 0
      %1758 = vmatprep.mubr.bf16.mxu0 0
      %1759 = vmatmul.mubr.bf16.gmra.mrb[0].mxu0 %v1697
      %v1760 = vpop.f32.mrb[0].mxu0
      %v1761 = vadd.f32 0.0, %v1760
      %v1762 = vpop.f32.mrb[0].mxu0
      %v1763 = vpop.f32.mrb[0].mxu0
      %v1764 = vadd.f32 0.0, %v1763
      %v1765 = vpop.f32.mrb[0].mxu0
      %1766 = vmatprep.mubr.bf16.mxu0 0
      %1767 = vmatmul.mubr.bf16.gmra.mrb[0].mxu0 %v1700
      %v1768 = vpop.f32.mrb[0].mxu0
      %v1769 = vadd.f32 0.0, %v1768
      %v1770 = vpop.f32.mrb[0].mxu0
      %v1771 = vpop.f32.mrb[0].mxu0
      %v1772 = vadd.f32 0.0, %v1771
      %v1773 = vpop.f32.mrb[0].mxu0
      %1774 = vmatprep.mubr.bf16.mxu0 0
      %1775 = vmatmul.mubr.bf16.gmra.mrb[0].mxu0 %v1703
      %v1776 = vpop.f32.mrb[0].mxu0
      %v1777 = vadd.f32 0.0, %v1776
      %v1778 = vpop.f32.mrb[0].mxu0
      %v1779 = vpop.f32.mrb[0].mxu0
      %v1780 = vadd.f32 0.0, %v1779
      %v1781 = vpop.f32.mrb[0].mxu0
      %1782 = vmatprep.mubr.bf16.mxu0 0
      %1783 = vmatmul.mubr.bf16.gmra.mrb[0].mxu0 %v1706
      %v1784 = vpop.f32.mrb[0].mxu0
      %v1785 = vadd.f32 0.0, %v1784
      %v1786 = vpop.f32.mrb[0].mxu0
      %v1787 = vpop.f32.mrb[0].mxu0
      %v1788 = vadd.f32 0.0, %v1787
      %v1789 = vpop.f32.mrb[0].mxu0
      %1790 = vmatprep.mubr.bf16.mxu0 0
      %1791 = vmatmul.mubr.bf16.gmra.mrb[0].mxu0 %v1709
      %v1792 = vpop.f32.mrb[0].mxu0
      %v1793 = vadd.f32 0.0, %v1792
      %v1794 = vpop.f32.mrb[0].mxu0
      %v1795 = vpop.f32.mrb[0].mxu0
      %v1796 = vadd.f32 0.0, %v1795
      %v1797 = vpop.f32.mrb[0].mxu0
      %1798 = vmatprep.mubr.bf16.mxu0 0
      %1799 = vmatmul.mubr.bf16.gmra.mrb[0].mxu0 %v1712
      %v1800 = vpop.f32.mrb[0].mxu0
      %v1801 = vadd.f32 0.0, %v1800
      %v1802 = vpop.f32.mrb[0].mxu0
      %v1803 = vpop.f32.mrb[0].mxu0
      %v1804 = vadd.f32 0.0, %v1803
      %v1805 = vpop.f32.mrb[0].mxu0
      %1806 = vmatprep.mubr.bf16.mxu0 0
      %1807 = vmatmul.mubr.bf16.gmra.mrb[0].mxu0 %v1715
      %v1808 = vpop.f32.mrb[0].mxu0
      %v1809 = vadd.f32 0.0, %v1808
      %v1810 = vpop.f32.mrb[0].mxu0
      %v1811 = vpop.f32.mrb[0].mxu0
      %v1812 = vadd.f32 0.0, %v1811
      %v1813 = vpop.f32.mrb[0].mxu0
      %1814 = vmatprep.mubr.bf16.mxu0 0
      %1815 = vmatmul.mubr.bf16.gmra.mrb[0].mxu0 %v1718
      %v1816 = vpop.f32.mrb[0].mxu0
      %v1817 = vadd.f32 0.0, %v1816
      %v1818 = vpop.f32.mrb[0].mxu0
      %v1819 = vpop.f32.mrb[0].mxu0
      %v1820 = vadd.f32 0.0, %v1819
      %v1821 = vpop.f32.mrb[0].mxu0
      %1822 = vmatprep.mubr.bf16.mxu0 0
      %1823 = vmatmul.mubr.bf16.gmra.mrb[0].mxu0 %v1721
      %v1824 = vpop.f32.mrb[0].mxu0
      %v1825 = vadd.f32 0.0, %v1824
      %v1826 = vpop.f32.mrb[0].mxu0
      %v1827 = vpop.f32.mrb[0].mxu0
      %v1828 = vadd.f32 0.0, %v1827
      %v1829 = vpop.f32.mrb[0].mxu0
      %1830 = vdwg.mxu0
      %v1831 = vadd.f32 %v1658, %v1761
      %v1832 = vadd.f32 %v1659, %v1764
      %v1833 = vadd.f32 %v1660, %v1769
      %v1834 = vadd.f32 %v1661, %v1772
      %v1835 = vadd.f32 %v1662, %v1777
      %v1836 = vadd.f32 %v1663, %v1780
      %v1837 = vadd.f32 %v1664, %v1785
      %v1838 = vadd.f32 %v1665, %v1788
      %v1839 = vadd.f32 %v1666, %v1793
      %v1840 = vadd.f32 %v1667, %v1796
      %v1841 = vadd.f32 %v1668, %v1801
      %v1842 = vadd.f32 %v1669, %v1804
      %v1843 = vadd.f32 %v1670, %v1809
      %v1844 = vadd.f32 %v1671, %v1812
      %v1845 = vadd.f32 %v1672, %v1817
      %v1846 = vadd.f32 %v1673, %v1820
      %v1847 = vadd.f32 %v1674, %v1825
      %v1848 = vadd.f32 %v1675, %v1828
      %v1849 = vld [vmem:[%s2] sm:$0x1]
      %v1851 = vlaneseq
      %v1852 = vshrl.u32 %v1851, 7
      %v1853 = vsub.s32 0, %v1852
      %v1854 = vrot.slane %v1849, %v1853
      %v1856 = vadd.f32 %v1831, %v1854
      %v1857 = vadd.f32 %v1832, %v1854
      %v1858 = vadd.f32 %v1833, %v1854
      %v1859 = vadd.f32 %v1834, %v1854
      %v1860 = vadd.f32 %v1835, %v1854
      %v1861 = vadd.f32 %v1836, %v1854
      %v1862 = vadd.f32 %v1837, %v1854
      %v1863 = vadd.f32 %v1838, %v1854
      %v1864 = vadd.f32 %v1839, %v1854
      %v1865 = vadd.f32 %v1840, %v1854
      %v1866 = vadd.f32 %v1841, %v1854
      %v1867 = vadd.f32 %v1842, %v1854
      %v1868 = vadd.f32 %v1843, %v1854
      %v1869 = vadd.f32 %v1844, %v1854
      %v1870 = vadd.f32 %v1845, %v1854
      %v1871 = vadd.f32 %v1846, %v1854
      %v1872 = vadd.f32 %v1847, %v1854
      %v1873 = vadd.f32 %v1848, %v1854
      %v1874 = vmax.f32 %v1856, 0.0
      %v1875 = vmax.f32 %v1857, 0.0
      %v1876 = vmax.f32 %v1858, 0.0
      %v1877 = vmax.f32 %v1859, 0.0
      %v1878 = vmax.f32 %v1860, 0.0
      %v1879 = vmax.f32 %v1861, 0.0
      %v1880 = vmax.f32 %v1862, 0.0
      %v1881 = vmax.f32 %v1863, 0.0
      %v1882 = vmax.f32 %v1864, 0.0
      %v1883 = vmax.f32 %v1865, 0.0
      %v1884 = vmax.f32 %v1866, 0.0
      %v1885 = vmax.f32 %v1867, 0.0
      %v1886 = vmax.f32 %v1868, 0.0
      %v1887 = vmax.f32 %v1869, 0.0
      %v1888 = vmax.f32 %v1870, 0.0
      %v1889 = vmax.f32 %v1871, 0.0
      %v1890 = vmax.f32 %v1872, 0.0
      %v1891 = vmax.f32 %v1873, 0.0
      %v1892 = vmin.f32 %v1874, 6.0
      %v1893 = vmin.f32 %v1875, 6.0
      %v1894 = vmin.f32 %v1876, 6.0
      %v1895 = vmin.f32 %v1877, 6.0
      %v1896 = vmin.f32 %v1878, 6.0
      %v1897 = vmin.f32 %v1879, 6.0
      %v1898 = vmin.f32 %v1880, 6.0
      %v1899 = vmin.f32 %v1881, 6.0
      %v1900 = vmin.f32 %v1882, 6.0
      %v1901 = vmin.f32 %v1883, 6.0
      %v1902 = vmin.f32 %v1884, 6.0
      %v1903 = vmin.f32 %v1885, 6.0
      %v1904 = vmin.f32 %v1886, 6.0
      %v1905 = vmin.f32 %v1887, 6.0
      %v1906 = vmin.f32 %v1888, 6.0
      %v1907 = vmin.f32 %v1889, 6.0
      %v1908 = vmin.f32 %v1890, 6.0
      %v1909 = vmin.f32 %v1891, 6.0
      %vm1910 = vcmask 64512
      %1911 = vst.msk [vmem:[%s206] sm:$0xff] %vm1910, %v1892
      %1912 = vst.msk [vmem:[%s206 + $0x8] sm:$0xff] %vm1910, %v1893
      %1913 = vst.msk [vmem:[%s206 + $0x10] sm:$0xff] %vm1910, %v1894
      %1914 = vst.msk [vmem:[%s206 + $0x18] sm:$0xff] %vm1910, %v1895
      %1915 = vst.msk [vmem:[%s206 + $0x20] sm:$0xff] %vm1910, %v1896
      %1916 = vst.msk [vmem:[%s206 + $0x28] sm:$0xff] %vm1910, %v1897
      %1917 = vst.msk [vmem:[%s206 + $0x30] sm:$0xff] %vm1910, %v1898
      %1918 = vst.msk [vmem:[%s206 + $0x38] sm:$0xff] %vm1910, %v1899
      %1919 = vst.msk [vmem:[%s206 + $0x40] sm:$0xff] %vm1910, %v1900
      %1920 = vst.msk [vmem:[%s206 + $0x48] sm:$0xff] %vm1910, %v1901
      %1921 = vst.msk [vmem:[%s206 + $0x50] sm:$0xff] %vm1910, %v1902
      %1922 = vst.msk [vmem:[%s206 + $0x58] sm:$0xff] %vm1910, %v1903
      %1923 = vst.msk [vmem:[%s206 + $0x60] sm:$0xff] %vm1910, %v1904
      %1924 = vst.msk [vmem:[%s206 + $0x68] sm:$0xff] %vm1910, %v1905
      %1925 = vst.msk [vmem:[%s206 + $0x70] sm:$0xff] %vm1910, %v1906
      %1926 = vst.msk [vmem:[%s206 + $0x78] sm:$0xff] %vm1910, %v1907
      %1927 = vst.msk [vmem:[%s206 + $0x80] sm:$0xff] %vm1910, %v1908
      %1928 = vst.msk [vmem:[%s206 + $0x88] sm:$0xff] %vm1910, %v1909
      %p1929 = scmp.lt.s32.totalorder %s18, 1
      %s1930 = scalar_select %p1929, %s18, 1
      %p1931 = scmp.lt.s32.totalorder %s19, 1
      %s1932 = scalar_select %p1931, %s19, 1
      %s1933 = smul.addr %s1932, 18
      %s1934 = smul.addr %s1930, 36
      %s1935 = sadd.s32 %s1933, %s1934
      %s1936 = smul.addr %s1935, 8
      %s1937 = scalar_lea.vmem %s3, %s1936
      // Predicated region
      $region33: #{repvgg_block_forward.1} parent=31 // pred_check
        %p1938 = pneg %p116
      $region34: #{repvgg_block_forward.1} parent=31 // pred_check_branch
        %1940 = sbr.rel (%p1938) target = $region36
      $region35: #{repvgg_block_forward.1} parent=31 // pred_region
        _
      $region36: #{repvgg_block_forward.1} parent=31 // pred_fallthru
        _
    $region32: #{repvgg_block_forward.1} parent=5 // pred_fallthru
      _
    %p1941 = scmp.le.s32.totalorder 2, %s9
    // Predicated region
    $region37: #{repvgg_block_forward.1} parent=5 // pred_check
      %p1942 = pneg %p1941
    $region38: #{repvgg_block_forward.1} parent=5 // pred_check_branch
      %1944 = sbr.rel (%p1942) target = $region40
    $region39: #{repvgg_block_forward.1} parent=5 // pred_region
      %s1945 = ssub.s32 %s9, 2
      // Predicated region
      $region41: #{repvgg_block_forward.1} parent=39 // pred_check
        %p1946 = pneg %p122
      $region42: #{repvgg_block_forward.1} parent=39 // pred_check_branch
        %1948 = sbr.rel (%p1946) target = $region44
      $region43: #{repvgg_block_forward.1} parent=39 // pred_region
        %p1949 = scmp.lt.s32.totalorder %s20, 1
        %s1950 = scalar_select %p1949, %s20, 1
        %p1951 = scmp.lt.s32.totalorder %s21, 1
        %s1952 = scalar_select %p1951, %s21, 1
        %s1953 = smul.addr %s1952, 18
        %s1954 = smul.addr %s1950, 36
        %s1955 = sadd.s32 %s1953, %s1954
        %s1956 = smul.addr %s1955, 8
        %s1957 = scalar_lea.vmem %s3, %s1956
      $region44: #{repvgg_block_forward.1} parent=39 // pred_fallthru
        _
    $region40: #{repvgg_block_forward.1} parent=5 // pred_fallthru
      _
  $region6: #{repvgg_block_forward.1} parent=0 // loop_footer
    %s13 = sadd.s32 1, %s9
  $region7: #{repvgg_block_forward.1} parent=0 // loop_footer_branch
    %8 = sbr.rel target = $region3
  $region8: #{repvgg_block_forward.1} parent=0 // loop_exit
    _

</llo_original>
